<compile_context>
chip_gen: v5e
topology: v5e:2x2
jax: 0.10.0
libtpu: 0.0.40
codegen_flags: <defaults>
</compile_context>

<pallas_src>
import math

import jax
import jax.numpy as jnp
from jax.experimental import pallas as pl
from jax.experimental.pallas import tpu as pltpu  # used at real sizes (vmem limit / semantics)

# ----------------------------- small config -----------------------------------
HIDDEN = 32          # hidden_size
NUM_HEADS = 4
HEAD_DIM = HIDDEN // NUM_HEADS
MLP_HID = int(HIDDEN * 4.0)
DEPTH = 2
TOKEN_LEN = 8
NUM_CLASSES = 10
IN_CH = 4
OUT_CH = IN_CH * 2   # learn_sigma=True
OUT_PAD = 128        # lane-dense output slab, sliced back to OUT_CH in the wrapper
FREQ = 256           # frequency_embedding_size
EPS = 1e-6
BATCH = 2


# ----------------------------- shared math helpers -----------------------------
def _layernorm(x, eps=EPS):
    mu = jnp.mean(x, axis=-1, keepdims=True)
    var = jnp.mean((x - mu) ** 2, axis=-1, keepdims=True)
    return (x - mu) * jax.lax.rsqrt(var + eps)


def _gelu_tanh(x):
    return 0.5 * x * (1.0 + jnp.tanh(0.7978845608028654 * (x + 0.044715 * x * x * x)))


def _silu(x):
    return x * jax.nn.sigmoid(x)


# ----------------------------- fused Pallas kernel ------------------------------
def dit_fused_kernel(x_ref, bmod_ref, fmod_ref,
                     wqkv_ref, bqkv_ref, wproj_ref, bproj_ref,
                     wfc1_ref, bfc1_ref, wfc2_ref, bfc2_ref,
                     wlin_ref, blin_ref, o_ref):
    """Whole batch through DEPTH DiT blocks + final layer; x stays in VMEM."""
    B, T, H = x_ref.shape
    BT = B * T
    NH, HD = NUM_HEADS, HEAD_DIM
    inv_sqrt_d = HD ** -0.5

    x = x_ref[...]                               # (B, T, H)
    mods = bmod_ref[...]                         # (B, DEPTH, 6, H); scale rows already hold 1+scale

    def split_heads(z2d):                        # (BT, H) -> (NH*B, T, HD), head-major batch axis
        return jnp.concatenate(
            [z2d[:, n * HD:(n + 1) * HD].reshape(B, T, HD) for n in range(NH)], axis=0)

    for d in range(DEPTH):                       # DEPTH=2 -> fully unrolled
        mod = mods[:, d]                         # (B, 6, H)
        shift_msa, scale_msa, gate_msa = mod[:, 0:1], mod[:, 1:2], mod[:, 2:3]
        shift_mlp, scale_mlp, gate_mlp = mod[:, 3:4], mod[:, 4:5], mod[:, 5:6]

        # ----------------- attention branch -----------------
        xm = (_layernorm(x) * scale_msa + shift_msa).reshape(BT, H)
        qkv = jnp.dot(xm, wqkv_ref[d], preferred_element_type=jnp.float32) + bqkv_ref[d]
        q = split_heads(qkv[:, 0 * H:1 * H]) * inv_sqrt_d   # 1/sqrt(d) folded into q
        k = split_heads(qkv[:, 1 * H:2 * H])
        v = split_heads(qkv[:, 2 * H:3 * H])

        s = jnp.einsum('bqd,bkd->bqk', q, k,
                       preferred_element_type=jnp.float32)  # (NH*B, T, T)
        s = s - jnp.max(s, axis=-1, keepdims=True)
        p = jnp.exp(s)
        p = p * pl.reciprocal(jnp.sum(p, axis=-1, keepdims=True), approx=False)
        o = jnp.einsum('bqk,bkd->bqd', p, v,
                       preferred_element_type=jnp.float32)  # (NH*B, T, HD)

        # head-merge back to lane-major (BT, H), then ONE (BT,H)@(H,H) projection
        o2d = jnp.concatenate(
            [o[n * B:(n + 1) * B].reshape(BT, HD) for n in range(NH)], axis=-1)
        attn = jnp.dot(o2d, wproj_ref[d], preferred_element_type=jnp.float32) + bproj_ref[d]
        x = x + gate_msa * attn.reshape(B, T, H)

        # ----------------- MLP branch -----------------
        xm2 = (_layernorm(x) * scale_mlp + shift_mlp).reshape(BT, H)
        h1 = _gelu_tanh(jnp.dot(xm2, wfc1_ref[d], preferred_element_type=jnp.float32)
                        + bfc1_ref[d])
        h2 = jnp.dot(h1, wfc2_ref[d], preferred_element_type=jnp.float32) + bfc2_ref[d]
        x = x + gate_mlp * h2.reshape(B, T, H)

    # ----------------- final layer (lane-dense 128-wide output) -----------------
    fmod = fmod_ref[...]                         # (B, 2, H): [shift, 1+scale]
    xf = (_layernorm(x) * fmod[:, 1:2] + fmod[:, 0:1]).reshape(BT, H)
    out = jnp.dot(xf, wlin_ref[...], preferred_element_type=jnp.float32) + blin_ref[...]
    o_ref[...] = out.reshape(B, T, OUT_PAD)


WEIGHT_KEYS = ('wqkv', 'bqkv', 'wproj', 'bproj',
               'wfc1', 'bfc1', 'wfc2', 'bfc2', 'wlin', 'blin')


def run_dit_fused(x, bmods, fmods, pw):
    B, T, _ = x.shape
    weights = [pw[k] for k in WEIGHT_KEYS]
    # Single pallas_call, no grid: everything (tiny) lives whole in VMEM for the
    # entire backbone -> 1 launch, no per-step grid overhead, weights DMA'd once.
    # TODO(synk): at real DiT sizes (H~1152, depth~28) make depth an "arbitrary"
    # grid axis with per-block weight index maps (d -> (d, ...)), cast MXU operands
    # to bf16 and set pltpu.CompilerParams(vmem_limit_bytes=...) so block weights
    # stream/double-buffer instead of being VMEM-resident (v7x has only 64 MiB).
    out = pl.pallas_call(
        dit_fused_kernel,
        out_shape=jax.ShapeDtypeStruct((B, T, OUT_PAD), jnp.float32),
    )(x, bmods, fmods, *weights)
    return out[..., :OUT_CH]     # drop the lane padding of the final projection


# ----------------------------- parameters (deterministic) -----------------------
def init_params(key):
    ks = iter(jax.random.split(key, 128))

    def mat(shape, scale=0.02):
        return jax.random.normal(next(ks), shape, jnp.float32) * scale

    params = {
        'x_emb': mat((TOKEN_LEN + 1, HIDDEN)),
        'pos': mat((1, TOKEN_LEN, HIDDEN)),
        'y_emb': mat((NUM_CLASSES + 1, HIDDEN)),
        't_w1': mat((FREQ, HIDDEN)), 't_b1': mat((HIDDEN,), 0.01),
        't_w2': mat((HIDDEN, HIDDEN)), 't_b2': mat((HIDDEN,), 0.01),
        'blocks': [],
        'final': {},
    }
    # NOTE: the PyTorch initialize_weights() zeroes adaLN/final weights (identity start).
    # Small random values are used instead so the test exercises every branch; the
    # forward semantics are unchanged.
    for _ in range(DEPTH):
        params['blocks'].append({
            'w_ada': mat((HIDDEN, 6 * HIDDEN)), 'b_ada': mat((1, 6 * HIDDEN), 0.01),
            'w_qkv': mat((HIDDEN, 3 * HIDDEN)), 'b_qkv': mat((1, 3 * HIDDEN), 0.01),
            'w_proj': mat((HIDDEN, HIDDEN)), 'b_proj': mat((1, HIDDEN), 0.01),
            'w_fc1': mat((HIDDEN, MLP_HID)), 'b_fc1': mat((1, MLP_HID), 0.01),
            'w_fc2': mat((MLP_HID, HIDDEN)), 'b_fc2': mat((1, HIDDEN), 0.01),
        })
    params['final'] = {
        'w_ada': mat((HIDDEN, 2 * HIDDEN)), 'b_ada': mat((1, 2 * HIDDEN), 0.01),
        'w_lin': mat((HIDDEN, OUT_CH)), 'b_lin': mat((1, OUT_CH), 0.01),
    }
    return params


def pack_params(params):
    """Re-layout torch-style weights into the fused-kernel layout (done once)."""
    packed = {k: params[k] for k in
              ('x_emb', 'pos', 'y_emb', 't_w1', 't_b1', 't_w2', 't_b2')}
    acc = {k: [] for k in ('wqkv', 'bqkv', 'wproj', 'bproj',
                           'wfc1', 'bfc1', 'wfc2', 'bfc2', 'w_ada', 'b_ada')}
    for bp in params['blocks']:
        acc['wqkv'].append(bp['w_qkv']); acc['bqkv'].append(bp['b_qkv'])
        acc['wproj'].append(bp['w_proj']); acc['bproj'].append(bp['b_proj'])
        acc['wfc1'].append(bp['w_fc1']); acc['bfc1'].append(bp['b_fc1'])
        acc['wfc2'].append(bp['w_fc2']); acc['bfc2'].append(bp['b_fc2'])
        acc['w_ada'].append(bp['w_ada']); acc['b_ada'].append(bp['b_ada'])
    for k, v in acc.items():
        packed[k] = jnp.stack(v, axis=0)                       # leading DEPTH axis
    packed['w_ada_f'] = params['final']['w_ada']
    packed['b_ada_f'] = params['final']['b_ada']
    # Lane-dense final linear: zero-pad OUT_CH -> OUT_PAD output lanes.
    packed['wlin'] = (jnp.zeros((HIDDEN, OUT_PAD), jnp.float32)
                      .at[:, :OUT_CH].set(params['final']['w_lin']))
    packed['blin'] = (jnp.zeros((1, OUT_PAD), jnp.float32)
                      .at[:, :OUT_CH].set(params['final']['b_lin']))
    return packed


# ----------------------------- glue (plain JAX) ---------------------------------
# TODO(synk): embedding gathers, sinusoidal timestep embedding and the tiny
# t-embedder MLP / adaLN matmuls are left as plain-JAX glue (no benefit from a
# dedicated kernel at this size). CFG label dropout is train-only and skipped.
def timestep_embedding(t, dim, max_period=10000):
    half = dim // 2
    freqs = jnp.exp(-math.log(max_period) * jnp.arange(half, dtype=jnp.float32) / half)
    args = t[:, None].astype(jnp.float32) * freqs[None]
    return jnp.concatenate([jnp.cos(args), jnp.sin(args)], axis=-1)


def dit1d_forward(pw, x_tokens, t, y):
    B = x_tokens.shape[0]
    # x_embedder + pos_embed
    x = jnp.take(pw['x_emb'], x_tokens, axis=0) + pw['pos']          # (B, T, H)
    # t_embedder
    tf = timestep_embedding(t, FREQ)
    t_emb = _silu(tf @ pw['t_w1'] + pw['t_b1']) @ pw['t_w2'] + pw['t_b2']
    # y_embedder (eval mode: no classifier-free-guidance dropout)
    c = t_emb + jnp.take(pw['y_emb'], y, axis=0)                     # (B, H)
    # adaLN modulation for every block + final layer, precomputed once per call
    silu_c = _silu(c)
    bmods = (jnp.einsum('bh,dhk->bdk', silu_c, pw['w_ada'])
             + pw['b_ada'].reshape(1, DEPTH, 6 * HIDDEN)).reshape(B, DEPTH, 6, HIDDEN)
    # hoist adaLN's (1 + scale) into the precomputed modulation tensor
    bmods = bmods + jnp.array([0., 1., 0., 0., 1., 0.], jnp.float32)[None, None, :, None]
    fmods = (silu_c @ pw['w_ada_f'] + pw['b_ada_f']).reshape(B, 2, HIDDEN)
    fmods = fmods + jnp.array([0., 1.], jnp.float32)[None, :, None]
    return run_dit_fused(x, bmods, fmods, pw)


# ----------------------------- pure-JAX reference -------------------------------
def ref_block(x, c, p):
    B, T, H = x.shape
    mod = _silu(c) @ p['w_ada'] + p['b_ada']
    s_msa, sc_msa, g_msa, s_mlp, sc_mlp, g_mlp = jnp.split(mod, 6, axis=-1)
    xm = _layernorm(x) * (1 + sc_msa[:, None, :]) + s_msa[:, None, :]
    qkv = xm @ p['w_qkv'] + p['b_qkv'][None]
    q, k, v = jnp.split(qkv, 3, axis=-1)

    def heads(z):
        return z.reshape(B, T, NUM_HEADS, HEAD_DIM).transpose(0, 2, 1, 3)

    qh, kh, vh = heads(q), heads(k), heads(v)
    s = jnp.einsum('bhqd,bhkd->bhqk', qh, kh) * HEAD_DIM ** -0.5
    a = jax.nn.softmax(s, axis=-1)
    o = jnp.einsum('bhqk,bhkd->bhqd', a, vh).transpose(0, 2, 1, 3).reshape(B, T, H)
    o = o @ p['w_proj'] + p['b_proj'][None]
    x = x + g_msa[:, None, :] * o
    xm2 = _layernorm(x) * (1 + sc_mlp[:, None, :]) + s_mlp[:, None, :]
    h1 = _gelu_tanh(xm2 @ p['w_fc1'] + p['b_fc1'][None])
    return x + g_mlp[:, None, :] * (h1 @ p['w_fc2'] + p['b_fc2'][None])


def ref_forward(params, x_tokens, t, y):
    x = jnp.take(params['x_emb'], x_tokens, axis=0) + params['pos']
    tf = timestep_embedding(t, FREQ)
    t_emb = _silu(tf @ params['t_w1'] + params['t_b1']) @ params['t_w2'] + params['t_b2']
    c = t_emb + jnp.take(params['y_emb'], y, axis=0)
    for bp in params['blocks']:
        x = ref_block(x, c, bp)
    fp = params['final']
    mod = _silu(c) @ fp['w_ada'] + fp['b_ada']
    shift, scale = jnp.split(mod, 2, axis=-1)
    xm = _layernorm(x) * (1 + scale[:, None, :]) + shift[:, None, :]
    return xm @ fp['w_lin'] + fp['b_lin'][None]


# ----------------------------- main ----------------------------------------------
if __name__ == "__main__":
    key = jax.random.PRNGKey(0)
    kp, kx, kt, ky = jax.random.split(key, 4)
    params = init_params(kp)
    packed = pack_params(params)

    x_tokens = jax.random.randint(kx, (BATCH, TOKEN_LEN), 0, TOKEN_LEN + 1, dtype=jnp.int32)
    t = jax.random.uniform(kt, (BATCH,), jnp.float32) * 1000.0
    y = jax.random.randint(ky, (BATCH,), 0, NUM_CLASSES, dtype=jnp.int32)

    fwd = jax.jit(dit1d_forward)
    out = jax.block_until_ready(fwd(packed, x_tokens, t, y))
    ref = jax.block_until_ready(ref_forward(params, x_tokens, t, y))

    assert out.shape == (BATCH, TOKEN_LEN, OUT_CH), out.shape
    max_err = float(jnp.max(jnp.abs(out - ref)))
    assert jnp.allclose(out, ref, rtol=1e-4, atol=1e-4), max_err
    print("KERNEL_OK")
</pallas_src>

<mosaic_0001>
module attributes {stable_mosaic.version = 11 : i64} {
  func.func @dit_fused_kernel(%arg0: memref<2x8x32xf32, #tpu.memory_space<vmem>>, %arg1: memref<2x2x6x32xf32, #tpu.memory_space<vmem>>, %arg2: memref<2x2x32xf32, #tpu.memory_space<vmem>>, %arg3: memref<2x32x96xf32, #tpu.memory_space<vmem>>, %arg4: memref<2x1x96xf32, #tpu.memory_space<vmem>>, %arg5: memref<2x32x32xf32, #tpu.memory_space<vmem>>, %arg6: memref<2x1x32xf32, #tpu.memory_space<vmem>>, %arg7: memref<2x32x128xf32, #tpu.memory_space<vmem>>, %arg8: memref<2x1x128xf32, #tpu.memory_space<vmem>>, %arg9: memref<2x128x32xf32, #tpu.memory_space<vmem>>, %arg10: memref<2x1x32xf32, #tpu.memory_space<vmem>>, %arg11: memref<32x128xf32, #tpu.memory_space<vmem>>, %arg12: memref<1x128xf32, #tpu.memory_space<vmem>>, %arg13: memref<2x8x128xf32, #tpu.memory_space<vmem>>) attributes {dimension_semantics = [], scalar_prefetch = 0 : i64, scratch_operands = 0 : i64, tpu.core_type = #tpu.core_type<tc>} {
    %c0 = arith.constant 0 : index
    %c0_0 = arith.constant 0 : index
    %c0_1 = arith.constant 0 : index
    %0 = vector.load %arg0[%c0, %c0_0, %c0_1] : memref<2x8x32xf32, #tpu.memory_space<vmem>>, vector<2x8x32xf32>
    %c0_2 = arith.constant 0 : index
    %c0_3 = arith.constant 0 : index
    %c0_4 = arith.constant 0 : index
    %c0_5 = arith.constant 0 : index
    %1 = vector.load %arg1[%c0_2, %c0_3, %c0_4, %c0_5] : memref<2x2x6x32xf32, #tpu.memory_space<vmem>>, vector<2x2x6x32xf32>
    %2 = vector.extract_strided_slice %1 {offsets = [0, 0, 0, 0], sizes = [2, 1, 6, 32], strides = [1, 1, 1, 1]} : vector<2x2x6x32xf32> to vector<2x1x6x32xf32>
    %3 = vector.shape_cast %2 : vector<2x1x6x32xf32> to vector<2x6x32xf32>
    %4 = vector.extract_strided_slice %3 {offsets = [0, 0, 0], sizes = [2, 1, 32], strides = [1, 1, 1]} : vector<2x6x32xf32> to vector<2x1x32xf32>
    %5 = vector.extract_strided_slice %3 {offsets = [0, 1, 0], sizes = [2, 1, 32], strides = [1, 1, 1]} : vector<2x6x32xf32> to vector<2x1x32xf32>
    %6 = vector.extract_strided_slice %3 {offsets = [0, 2, 0], sizes = [2, 1, 32], strides = [1, 1, 1]} : vector<2x6x32xf32> to vector<2x1x32xf32>
    %7 = vector.extract_strided_slice %3 {offsets = [0, 3, 0], sizes = [2, 1, 32], strides = [1, 1, 1]} : vector<2x6x32xf32> to vector<2x1x32xf32>
    %8 = vector.extract_strided_slice %3 {offsets = [0, 4, 0], sizes = [2, 1, 32], strides = [1, 1, 1]} : vector<2x6x32xf32> to vector<2x1x32xf32>
    %9 = vector.extract_strided_slice %3 {offsets = [0, 5, 0], sizes = [2, 1, 32], strides = [1, 1, 1]} : vector<2x6x32xf32> to vector<2x1x32xf32>
    %cst = arith.constant dense<0.000000e+00> : vector<2x8xf32>
    %10 = vector.multi_reduction <add>, %0, %cst [2] : vector<2x8x32xf32> to vector<2x8xf32>
    %11 = vector.shape_cast %10 : vector<2x8xf32> to vector<2x8x1xf32>
    %cst_6 = arith.constant 3.200000e+01 : f32
    %12 = vector.broadcast %cst_6 : f32 to vector<2x8x1xf32>
    %13 = arith.divf %11, %12 : vector<2x8x1xf32>
    %14 = vector.broadcast %13 : vector<2x8x1xf32> to vector<2x8x32xf32>
    %15 = arith.subf %0, %14 : vector<2x8x32xf32>
    %16 = arith.mulf %15, %15 : vector<2x8x32xf32>
    %cst_7 = arith.constant dense<0.000000e+00> : vector<2x8xf32>
    %17 = vector.multi_reduction <add>, %16, %cst_7 [2] : vector<2x8x32xf32> to vector<2x8xf32>
    %18 = vector.shape_cast %17 : vector<2x8xf32> to vector<2x8x1xf32>
    %cst_8 = arith.constant 3.200000e+01 : f32
    %19 = vector.broadcast %cst_8 : f32 to vector<2x8x1xf32>
    %20 = arith.divf %18, %19 : vector<2x8x1xf32>
    %21 = vector.broadcast %13 : vector<2x8x1xf32> to vector<2x8x32xf32>
    %22 = arith.subf %0, %21 : vector<2x8x32xf32>
    %cst_9 = arith.constant 9.99999997E-7 : f32
    %23 = vector.broadcast %cst_9 : f32 to vector<2x8x1xf32>
    %24 = arith.addf %20, %23 : vector<2x8x1xf32>
    %25 = math.rsqrt %24 : vector<2x8x1xf32>
    %26 = vector.broadcast %25 : vector<2x8x1xf32> to vector<2x8x32xf32>
    %27 = arith.mulf %22, %26 : vector<2x8x32xf32>
    %28 = vector.broadcast %5 : vector<2x1x32xf32> to vector<2x8x32xf32>
    %29 = arith.mulf %27, %28 : vector<2x8x32xf32>
    %30 = vector.broadcast %4 : vector<2x1x32xf32> to vector<2x8x32xf32>
    %31 = arith.addf %29, %30 : vector<2x8x32xf32>
    %32 = vector.shape_cast %31 : vector<2x8x32xf32> to vector<16x32xf32>
    %c0_10 = arith.constant 0 : index
    %c0_11 = arith.constant 0 : index
    %c0_12 = arith.constant 0 : index
    %33 = vector.load %arg3[%c0_10, %c0_11, %c0_12] : memref<2x32x96xf32, #tpu.memory_space<vmem>>, vector<1x32x96xf32>
    %34 = vector.shape_cast %33 : vector<1x32x96xf32> to vector<32x96xf32>
    %cst_13 = arith.constant dense<0.000000e+00> : vector<16x96xf32>
    %35 = tpu.matmul %32, %34, %cst_13 {dimension_numbers = #tpu.dot_dimension_numbers<[1], [0], [0], [1], [0, 0, 1, 1], [], []>} : vector<16x32xf32>, vector<32x96xf32>, vector<16x96xf32> -> vector<16x96xf32>
    %c0_14 = arith.constant 0 : index
    %c0_15 = arith.constant 0 : index
    %c0_16 = arith.constant 0 : index
    %36 = vector.load %arg4[%c0_14, %c0_15, %c0_16] : memref<2x1x96xf32, #tpu.memory_space<vmem>>, vector<1x1x96xf32>
    %37 = vector.shape_cast %36 : vector<1x1x96xf32> to vector<1x96xf32>
    %38 = vector.broadcast %37 : vector<1x96xf32> to vector<16x96xf32>
    %39 = arith.addf %35, %38 : vector<16x96xf32>
    %40 = vector.extract_strided_slice %39 {offsets = [0, 0], sizes = [16, 32], strides = [1, 1]} : vector<16x96xf32> to vector<16x32xf32>
    %41 = vector.extract_strided_slice %40 {offsets = [0, 0], sizes = [16, 8], strides = [1, 1]} : vector<16x32xf32> to vector<16x8xf32>
    %42 = vector.shape_cast %41 : vector<16x8xf32> to vector<2x8x8xf32>
    %43 = vector.extract_strided_slice %40 {offsets = [0, 8], sizes = [16, 8], strides = [1, 1]} : vector<16x32xf32> to vector<16x8xf32>
    %44 = vector.shape_cast %43 : vector<16x8xf32> to vector<2x8x8xf32>
    %45 = vector.extract_strided_slice %40 {offsets = [0, 16], sizes = [16, 8], strides = [1, 1]} : vector<16x32xf32> to vector<16x8xf32>
    %46 = vector.shape_cast %45 : vector<16x8xf32> to vector<2x8x8xf32>
    %47 = vector.extract_strided_slice %40 {offsets = [0, 24], sizes = [16, 8], strides = [1, 1]} : vector<16x32xf32> to vector<16x8xf32>
    %48 = vector.shape_cast %47 : vector<16x8xf32> to vector<2x8x8xf32>
    %49 = tpu.concatenate %42, %44, %46, %48 in 0 : vector<2x8x8xf32>, vector<2x8x8xf32>, vector<2x8x8xf32>, vector<2x8x8xf32> -> vector<8x8x8xf32>
    %cst_17 = arith.constant 0.353553385 : f32
    %50 = vector.broadcast %cst_17 : f32 to vector<8x8x8xf32>
    %51 = arith.mulf %49, %50 : vector<8x8x8xf32>
    %52 = vector.extract_strided_slice %39 {offsets = [0, 32], sizes = [16, 32], strides = [1, 1]} : vector<16x96xf32> to vector<16x32xf32>
    %53 = vector.extract_strided_slice %52 {offsets = [0, 0], sizes = [16, 8], strides = [1, 1]} : vector<16x32xf32> to vector<16x8xf32>
    %54 = vector.shape_cast %53 : vector<16x8xf32> to vector<2x8x8xf32>
    %55 = vector.extract_strided_slice %52 {offsets = [0, 8], sizes = [16, 8], strides = [1, 1]} : vector<16x32xf32> to vector<16x8xf32>
    %56 = vector.shape_cast %55 : vector<16x8xf32> to vector<2x8x8xf32>
    %57 = vector.extract_strided_slice %52 {offsets = [0, 16], sizes = [16, 8], strides = [1, 1]} : vector<16x32xf32> to vector<16x8xf32>
    %58 = vector.shape_cast %57 : vector<16x8xf32> to vector<2x8x8xf32>
    %59 = vector.extract_strided_slice %52 {offsets = [0, 24], sizes = [16, 8], strides = [1, 1]} : vector<16x32xf32> to vector<16x8xf32>
    %60 = vector.shape_cast %59 : vector<16x8xf32> to vector<2x8x8xf32>
    %61 = tpu.concatenate %54, %56, %58, %60 in 0 : vector<2x8x8xf32>, vector<2x8x8xf32>, vector<2x8x8xf32>, vector<2x8x8xf32> -> vector<8x8x8xf32>
    %62 = vector.extract_strided_slice %39 {offsets = [0, 64], sizes = [16, 32], strides = [1, 1]} : vector<16x96xf32> to vector<16x32xf32>
    %63 = vector.extract_strided_slice %62 {offsets = [0, 0], sizes = [16, 8], strides = [1, 1]} : vector<16x32xf32> to vector<16x8xf32>
    %64 = vector.shape_cast %63 : vector<16x8xf32> to vector<2x8x8xf32>
    %65 = vector.extract_strided_slice %62 {offsets = [0, 8], sizes = [16, 8], strides = [1, 1]} : vector<16x32xf32> to vector<16x8xf32>
    %66 = vector.shape_cast %65 : vector<16x8xf32> to vector<2x8x8xf32>
    %67 = vector.extract_strided_slice %62 {offsets = [0, 16], sizes = [16, 8], strides = [1, 1]} : vector<16x32xf32> to vector<16x8xf32>
    %68 = vector.shape_cast %67 : vector<16x8xf32> to vector<2x8x8xf32>
    %69 = vector.extract_strided_slice %62 {offsets = [0, 24], sizes = [16, 8], strides = [1, 1]} : vector<16x32xf32> to vector<16x8xf32>
    %70 = vector.shape_cast %69 : vector<16x8xf32> to vector<2x8x8xf32>
    %71 = tpu.concatenate %64, %66, %68, %70 in 0 : vector<2x8x8xf32>, vector<2x8x8xf32>, vector<2x8x8xf32>, vector<2x8x8xf32> -> vector<8x8x8xf32>
    "tpu.trace_start"() <{level = 10 : i32, message = "bqd,bkd->bqk"}> : () -> ()
    %cst_18 = arith.constant dense<0.000000e+00> : vector<8x8x8xf32>
    %72 = tpu.matmul %51, %61, %cst_18 {dimension_numbers = #tpu.dot_dimension_numbers<[2], [2], [1], [1], [0, 0, 0, 1, 1, 1], [0], [0]>} : vector<8x8x8xf32>, vector<8x8x8xf32>, vector<8x8x8xf32> -> vector<8x8x8xf32>
    "tpu.trace_stop"() : () -> ()
    %cst_19 = arith.constant dense<0xFF800000> : vector<8x8xf32>
    %73 = vector.multi_reduction <maximumf>, %72, %cst_19 [2] : vector<8x8x8xf32> to vector<8x8xf32>
    %74 = vector.shape_cast %73 : vector<8x8xf32> to vector<8x8x1xf32>
    %75 = vector.broadcast %74 : vector<8x8x1xf32> to vector<8x8x8xf32>
    %76 = arith.subf %72, %75 : vector<8x8x8xf32>
    %77 = math.exp %76 : vector<8x8x8xf32>
    %cst_20 = arith.constant dense<0.000000e+00> : vector<8x8xf32>
    %78 = vector.multi_reduction <add>, %77, %cst_20 [2] : vector<8x8x8xf32> to vector<8x8xf32>
    %79 = vector.shape_cast %78 : vector<8x8xf32> to vector<8x8x1xf32>
    %80 = tpu.reciprocal %79 : vector<8x8x1xf32> -> vector<8x8x1xf32>
    %81 = vector.broadcast %80 : vector<8x8x1xf32> to vector<8x8x8xf32>
    %82 = arith.mulf %77, %81 : vector<8x8x8xf32>
    "tpu.trace_start"() <{level = 10 : i32, message = "bqk,bkd->bqd"}> : () -> ()
    %cst_21 = arith.constant dense<0.000000e+00> : vector<8x8x8xf32>
    %83 = tpu.matmul %82, %71, %cst_21 {dimension_numbers = #tpu.dot_dimension_numbers<[2], [1], [1], [2], [0, 0, 0, 1, 1, 2], [0], [0]>} : vector<8x8x8xf32>, vector<8x8x8xf32>, vector<8x8x8xf32> -> vector<8x8x8xf32>
    "tpu.trace_stop"() : () -> ()
    %84 = vector.extract_strided_slice %83 {offsets = [0, 0, 0], sizes = [2, 8, 8], strides = [1, 1, 1]} : vector<8x8x8xf32> to vector<2x8x8xf32>
    %85 = vector.shape_cast %84 : vector<2x8x8xf32> to vector<16x8xf32>
    %86 = vector.extract_strided_slice %83 {offsets = [2, 0, 0], sizes = [2, 8, 8], strides = [1, 1, 1]} : vector<8x8x8xf32> to vector<2x8x8xf32>
    %87 = vector.shape_cast %86 : vector<2x8x8xf32> to vector<16x8xf32>
    %88 = vector.extract_strided_slice %83 {offsets = [4, 0, 0], sizes = [2, 8, 8], strides = [1, 1, 1]} : vector<8x8x8xf32> to vector<2x8x8xf32>
    %89 = vector.shape_cast %88 : vector<2x8x8xf32> to vector<16x8xf32>
    %90 = vector.extract_strided_slice %83 {offsets = [6, 0, 0], sizes = [2, 8, 8], strides = [1, 1, 1]} : vector<8x8x8xf32> to vector<2x8x8xf32>
    %91 = vector.shape_cast %90 : vector<2x8x8xf32> to vector<16x8xf32>
    %92 = tpu.concatenate %85, %87, %89, %91 in 1 : vector<16x8xf32>, vector<16x8xf32>, vector<16x8xf32>, vector<16x8xf32> -> vector<16x32xf32>
    %c0_22 = arith.constant 0 : index
    %c0_23 = arith.constant 0 : index
    %c0_24 = arith.constant 0 : index
    %93 = vector.load %arg5[%c0_22, %c0_23, %c0_24] : memref<2x32x32xf32, #tpu.memory_space<vmem>>, vector<1x32x32xf32>
    %94 = vector.shape_cast %93 : vector<1x32x32xf32> to vector<32x32xf32>
    %cst_25 = arith.constant dense<0.000000e+00> : vector<16x32xf32>
    %95 = tpu.matmul %92, %94, %cst_25 {dimension_numbers = #tpu.dot_dimension_numbers<[1], [0], [0], [1], [0, 0, 1, 1], [], []>} : vector<16x32xf32>, vector<32x32xf32>, vector<16x32xf32> -> vector<16x32xf32>
    %c0_26 = arith.constant 0 : index
    %c0_27 = arith.constant 0 : index
    %c0_28 = arith.constant 0 : index
    %96 = vector.load %arg6[%c0_26, %c0_27, %c0_28] : memref<2x1x32xf32, #tpu.memory_space<vmem>>, vector<1x1x32xf32>
    %97 = vector.shape_cast %96 : vector<1x1x32xf32> to vector<1x32xf32>
    %98 = vector.broadcast %97 : vector<1x32xf32> to vector<16x32xf32>
    %99 = arith.addf %95, %98 : vector<16x32xf32>
    %100 = vector.shape_cast %99 : vector<16x32xf32> to vector<2x8x32xf32>
    %101 = vector.broadcast %6 : vector<2x1x32xf32> to vector<2x8x32xf32>
    %102 = arith.mulf %101, %100 : vector<2x8x32xf32>
    %103 = arith.addf %0, %102 : vector<2x8x32xf32>
    %cst_29 = arith.constant dense<0.000000e+00> : vector<2x8xf32>
    %104 = vector.multi_reduction <add>, %103, %cst_29 [2] : vector<2x8x32xf32> to vector<2x8xf32>
    %105 = vector.shape_cast %104 : vector<2x8xf32> to vector<2x8x1xf32>
    %cst_30 = arith.constant 3.200000e+01 : f32
    %106 = vector.broadcast %cst_30 : f32 to vector<2x8x1xf32>
    %107 = arith.divf %105, %106 : vector<2x8x1xf32>
    %108 = vector.broadcast %107 : vector<2x8x1xf32> to vector<2x8x32xf32>
    %109 = arith.subf %103, %108 : vector<2x8x32xf32>
    %110 = arith.mulf %109, %109 : vector<2x8x32xf32>
    %cst_31 = arith.constant dense<0.000000e+00> : vector<2x8xf32>
    %111 = vector.multi_reduction <add>, %110, %cst_31 [2] : vector<2x8x32xf32> to vector<2x8xf32>
    %112 = vector.shape_cast %111 : vector<2x8xf32> to vector<2x8x1xf32>
    %cst_32 = arith.constant 3.200000e+01 : f32
    %113 = vector.broadcast %cst_32 : f32 to vector<2x8x1xf32>
    %114 = arith.divf %112, %113 : vector<2x8x1xf32>
    %115 = vector.broadcast %107 : vector<2x8x1xf32> to vector<2x8x32xf32>
    %116 = arith.subf %103, %115 : vector<2x8x32xf32>
    %cst_33 = arith.constant 9.99999997E-7 : f32
    %117 = vector.broadcast %cst_33 : f32 to vector<2x8x1xf32>
    %118 = arith.addf %114, %117 : vector<2x8x1xf32>
    %119 = math.rsqrt %118 : vector<2x8x1xf32>
    %120 = vector.broadcast %119 : vector<2x8x1xf32> to vector<2x8x32xf32>
    %121 = arith.mulf %116, %120 : vector<2x8x32xf32>
    %122 = vector.broadcast %8 : vector<2x1x32xf32> to vector<2x8x32xf32>
    %123 = arith.mulf %121, %122 : vector<2x8x32xf32>
    %124 = vector.broadcast %7 : vector<2x1x32xf32> to vector<2x8x32xf32>
    %125 = arith.addf %123, %124 : vector<2x8x32xf32>
    %126 = vector.shape_cast %125 : vector<2x8x32xf32> to vector<16x32xf32>
    %c0_34 = arith.constant 0 : index
    %c0_35 = arith.constant 0 : index
    %c0_36 = arith.constant 0 : index
    %127 = vector.load %arg7[%c0_34, %c0_35, %c0_36] : memref<2x32x128xf32, #tpu.memory_space<vmem>>, vector<1x32x128xf32>
    %128 = vector.shape_cast %127 : vector<1x32x128xf32> to vector<32x128xf32>
    %cst_37 = arith.constant dense<0.000000e+00> : vector<16x128xf32>
    %129 = tpu.matmul %126, %128, %cst_37 {dimension_numbers = #tpu.dot_dimension_numbers<[1], [0], [0], [1], [0, 0, 1, 1], [], []>} : vector<16x32xf32>, vector<32x128xf32>, vector<16x128xf32> -> vector<16x128xf32>
    %c0_38 = arith.constant 0 : index
    %c0_39 = arith.constant 0 : index
    %c0_40 = arith.constant 0 : index
    %130 = vector.load %arg8[%c0_38, %c0_39, %c0_40] : memref<2x1x128xf32, #tpu.memory_space<vmem>>, vector<1x1x128xf32>
    %131 = vector.shape_cast %130 : vector<1x1x128xf32> to vector<1x128xf32>
    %132 = vector.broadcast %131 : vector<1x128xf32> to vector<16x128xf32>
    %133 = arith.addf %129, %132 : vector<16x128xf32>
    %cst_41 = arith.constant 5.000000e-01 : f32
    %134 = vector.broadcast %cst_41 : f32 to vector<16x128xf32>
    %135 = arith.mulf %134, %133 : vector<16x128xf32>
    %cst_42 = arith.constant 4.471500e-02 : f32
    %136 = vector.broadcast %cst_42 : f32 to vector<16x128xf32>
    %137 = arith.mulf %136, %133 : vector<16x128xf32>
    %138 = arith.mulf %137, %133 : vector<16x128xf32>
    %139 = arith.mulf %138, %133 : vector<16x128xf32>
    %140 = arith.addf %133, %139 : vector<16x128xf32>
    %cst_43 = arith.constant 0.797884583 : f32
    %141 = vector.broadcast %cst_43 : f32 to vector<16x128xf32>
    %142 = arith.mulf %141, %140 : vector<16x128xf32>
    %143 = math.tanh %142 : vector<16x128xf32>
    %cst_44 = arith.constant 1.000000e+00 : f32
    %144 = vector.broadcast %cst_44 : f32 to vector<16x128xf32>
    %145 = arith.addf %144, %143 : vector<16x128xf32>
    %146 = arith.mulf %135, %145 : vector<16x128xf32>
    %c0_45 = arith.constant 0 : index
    %c0_46 = arith.constant 0 : index
    %c0_47 = arith.constant 0 : index
    %147 = vector.load %arg9[%c0_45, %c0_46, %c0_47] : memref<2x128x32xf32, #tpu.memory_space<vmem>>, vector<1x128x32xf32>
    %148 = vector.shape_cast %147 : vector<1x128x32xf32> to vector<128x32xf32>
    %cst_48 = arith.constant dense<0.000000e+00> : vector<16x32xf32>
    %149 = tpu.matmul %146, %148, %cst_48 {dimension_numbers = #tpu.dot_dimension_numbers<[1], [0], [0], [1], [0, 0, 1, 1], [], []>} : vector<16x128xf32>, vector<128x32xf32>, vector<16x32xf32> -> vector<16x32xf32>
    %c0_49 = arith.constant 0 : index
    %c0_50 = arith.constant 0 : index
    %c0_51 = arith.constant 0 : index
    %150 = vector.load %arg10[%c0_49, %c0_50, %c0_51] : memref<2x1x32xf32, #tpu.memory_space<vmem>>, vector<1x1x32xf32>
    %151 = vector.shape_cast %150 : vector<1x1x32xf32> to vector<1x32xf32>
    %152 = vector.broadcast %151 : vector<1x32xf32> to vector<16x32xf32>
    %153 = arith.addf %149, %152 : vector<16x32xf32>
    %154 = vector.shape_cast %153 : vector<16x32xf32> to vector<2x8x32xf32>
    %155 = vector.broadcast %9 : vector<2x1x32xf32> to vector<2x8x32xf32>
    %156 = arith.mulf %155, %154 : vector<2x8x32xf32>
    %157 = arith.addf %103, %156 : vector<2x8x32xf32>
    %158 = vector.extract_strided_slice %1 {offsets = [0, 1, 0, 0], sizes = [2, 1, 6, 32], strides = [1, 1, 1, 1]} : vector<2x2x6x32xf32> to vector<2x1x6x32xf32>
    %159 = vector.shape_cast %158 : vector<2x1x6x32xf32> to vector<2x6x32xf32>
    %160 = vector.extract_strided_slice %159 {offsets = [0, 0, 0], sizes = [2, 1, 32], strides = [1, 1, 1]} : vector<2x6x32xf32> to vector<2x1x32xf32>
    %161 = vector.extract_strided_slice %159 {offsets = [0, 1, 0], sizes = [2, 1, 32], strides = [1, 1, 1]} : vector<2x6x32xf32> to vector<2x1x32xf32>
    %162 = vector.extract_strided_slice %159 {offsets = [0, 2, 0], sizes = [2, 1, 32], strides = [1, 1, 1]} : vector<2x6x32xf32> to vector<2x1x32xf32>
    %163 = vector.extract_strided_slice %159 {offsets = [0, 3, 0], sizes = [2, 1, 32], strides = [1, 1, 1]} : vector<2x6x32xf32> to vector<2x1x32xf32>
    %164 = vector.extract_strided_slice %159 {offsets = [0, 4, 0], sizes = [2, 1, 32], strides = [1, 1, 1]} : vector<2x6x32xf32> to vector<2x1x32xf32>
    %165 = vector.extract_strided_slice %159 {offsets = [0, 5, 0], sizes = [2, 1, 32], strides = [1, 1, 1]} : vector<2x6x32xf32> to vector<2x1x32xf32>
    %cst_52 = arith.constant dense<0.000000e+00> : vector<2x8xf32>
    %166 = vector.multi_reduction <add>, %157, %cst_52 [2] : vector<2x8x32xf32> to vector<2x8xf32>
    %167 = vector.shape_cast %166 : vector<2x8xf32> to vector<2x8x1xf32>
    %cst_53 = arith.constant 3.200000e+01 : f32
    %168 = vector.broadcast %cst_53 : f32 to vector<2x8x1xf32>
    %169 = arith.divf %167, %168 : vector<2x8x1xf32>
    %170 = vector.broadcast %169 : vector<2x8x1xf32> to vector<2x8x32xf32>
    %171 = arith.subf %157, %170 : vector<2x8x32xf32>
    %172 = arith.mulf %171, %171 : vector<2x8x32xf32>
    %cst_54 = arith.constant dense<0.000000e+00> : vector<2x8xf32>
    %173 = vector.multi_reduction <add>, %172, %cst_54 [2] : vector<2x8x32xf32> to vector<2x8xf32>
    %174 = vector.shape_cast %173 : vector<2x8xf32> to vector<2x8x1xf32>
    %cst_55 = arith.constant 3.200000e+01 : f32
    %175 = vector.broadcast %cst_55 : f32 to vector<2x8x1xf32>
    %176 = arith.divf %174, %175 : vector<2x8x1xf32>
    %177 = vector.broadcast %169 : vector<2x8x1xf32> to vector<2x8x32xf32>
    %178 = arith.subf %157, %177 : vector<2x8x32xf32>
    %cst_56 = arith.constant 9.99999997E-7 : f32
    %179 = vector.broadcast %cst_56 : f32 to vector<2x8x1xf32>
    %180 = arith.addf %176, %179 : vector<2x8x1xf32>
    %181 = math.rsqrt %180 : vector<2x8x1xf32>
    %182 = vector.broadcast %181 : vector<2x8x1xf32> to vector<2x8x32xf32>
    %183 = arith.mulf %178, %182 : vector<2x8x32xf32>
    %184 = vector.broadcast %161 : vector<2x1x32xf32> to vector<2x8x32xf32>
    %185 = arith.mulf %183, %184 : vector<2x8x32xf32>
    %186 = vector.broadcast %160 : vector<2x1x32xf32> to vector<2x8x32xf32>
    %187 = arith.addf %185, %186 : vector<2x8x32xf32>
    %188 = vector.shape_cast %187 : vector<2x8x32xf32> to vector<16x32xf32>
    %c1 = arith.constant 1 : index
    %c0_57 = arith.constant 0 : index
    %c0_58 = arith.constant 0 : index
    %189 = vector.load %arg3[%c1, %c0_57, %c0_58] : memref<2x32x96xf32, #tpu.memory_space<vmem>>, vector<1x32x96xf32>
    %190 = vector.shape_cast %189 : vector<1x32x96xf32> to vector<32x96xf32>
    %cst_59 = arith.constant dense<0.000000e+00> : vector<16x96xf32>
    %191 = tpu.matmul %188, %190, %cst_59 {dimension_numbers = #tpu.dot_dimension_numbers<[1], [0], [0], [1], [0, 0, 1, 1], [], []>} : vector<16x32xf32>, vector<32x96xf32>, vector<16x96xf32> -> vector<16x96xf32>
    %c1_60 = arith.constant 1 : index
    %c0_61 = arith.constant 0 : index
    %c0_62 = arith.constant 0 : index
    %192 = vector.load %arg4[%c1_60, %c0_61, %c0_62] : memref<2x1x96xf32, #tpu.memory_space<vmem>>, vector<1x1x96xf32>
    %193 = vector.shape_cast %192 : vector<1x1x96xf32> to vector<1x96xf32>
    %194 = vector.broadcast %193 : vector<1x96xf32> to vector<16x96xf32>
    %195 = arith.addf %191, %194 : vector<16x96xf32>
    %196 = vector.extract_strided_slice %195 {offsets = [0, 0], sizes = [16, 32], strides = [1, 1]} : vector<16x96xf32> to vector<16x32xf32>
    %197 = vector.extract_strided_slice %196 {offsets = [0, 0], sizes = [16, 8], strides = [1, 1]} : vector<16x32xf32> to vector<16x8xf32>
    %198 = vector.shape_cast %197 : vector<16x8xf32> to vector<2x8x8xf32>
    %199 = vector.extract_strided_slice %196 {offsets = [0, 8], sizes = [16, 8], strides = [1, 1]} : vector<16x32xf32> to vector<16x8xf32>
    %200 = vector.shape_cast %199 : vector<16x8xf32> to vector<2x8x8xf32>
    %201 = vector.extract_strided_slice %196 {offsets = [0, 16], sizes = [16, 8], strides = [1, 1]} : vector<16x32xf32> to vector<16x8xf32>
    %202 = vector.shape_cast %201 : vector<16x8xf32> to vector<2x8x8xf32>
    %203 = vector.extract_strided_slice %196 {offsets = [0, 24], sizes = [16, 8], strides = [1, 1]} : vector<16x32xf32> to vector<16x8xf32>
    %204 = vector.shape_cast %203 : vector<16x8xf32> to vector<2x8x8xf32>
    %205 = tpu.concatenate %198, %200, %202, %204 in 0 : vector<2x8x8xf32>, vector<2x8x8xf32>, vector<2x8x8xf32>, vector<2x8x8xf32> -> vector<8x8x8xf32>
    %cst_63 = arith.constant 0.353553385 : f32
    %206 = vector.broadcast %cst_63 : f32 to vector<8x8x8xf32>
    %207 = arith.mulf %205, %206 : vector<8x8x8xf32>
    %208 = vector.extract_strided_slice %195 {offsets = [0, 32], sizes = [16, 32], strides = [1, 1]} : vector<16x96xf32> to vector<16x32xf32>
    %209 = vector.extract_strided_slice %208 {offsets = [0, 0], sizes = [16, 8], strides = [1, 1]} : vector<16x32xf32> to vector<16x8xf32>
    %210 = vector.shape_cast %209 : vector<16x8xf32> to vector<2x8x8xf32>
    %211 = vector.extract_strided_slice %208 {offsets = [0, 8], sizes = [16, 8], strides = [1, 1]} : vector<16x32xf32> to vector<16x8xf32>
    %212 = vector.shape_cast %211 : vector<16x8xf32> to vector<2x8x8xf32>
    %213 = vector.extract_strided_slice %208 {offsets = [0, 16], sizes = [16, 8], strides = [1, 1]} : vector<16x32xf32> to vector<16x8xf32>
    %214 = vector.shape_cast %213 : vector<16x8xf32> to vector<2x8x8xf32>
    %215 = vector.extract_strided_slice %208 {offsets = [0, 24], sizes = [16, 8], strides = [1, 1]} : vector<16x32xf32> to vector<16x8xf32>
    %216 = vector.shape_cast %215 : vector<16x8xf32> to vector<2x8x8xf32>
    %217 = tpu.concatenate %210, %212, %214, %216 in 0 : vector<2x8x8xf32>, vector<2x8x8xf32>, vector<2x8x8xf32>, vector<2x8x8xf32> -> vector<8x8x8xf32>
    %218 = vector.extract_strided_slice %195 {offsets = [0, 64], sizes = [16, 32], strides = [1, 1]} : vector<16x96xf32> to vector<16x32xf32>
    %219 = vector.extract_strided_slice %218 {offsets = [0, 0], sizes = [16, 8], strides = [1, 1]} : vector<16x32xf32> to vector<16x8xf32>
    %220 = vector.shape_cast %219 : vector<16x8xf32> to vector<2x8x8xf32>
    %221 = vector.extract_strided_slice %218 {offsets = [0, 8], sizes = [16, 8], strides = [1, 1]} : vector<16x32xf32> to vector<16x8xf32>
    %222 = vector.shape_cast %221 : vector<16x8xf32> to vector<2x8x8xf32>
    %223 = vector.extract_strided_slice %218 {offsets = [0, 16], sizes = [16, 8], strides = [1, 1]} : vector<16x32xf32> to vector<16x8xf32>
    %224 = vector.shape_cast %223 : vector<16x8xf32> to vector<2x8x8xf32>
    %225 = vector.extract_strided_slice %218 {offsets = [0, 24], sizes = [16, 8], strides = [1, 1]} : vector<16x32xf32> to vector<16x8xf32>
    %226 = vector.shape_cast %225 : vector<16x8xf32> to vector<2x8x8xf32>
    %227 = tpu.concatenate %220, %222, %224, %226 in 0 : vector<2x8x8xf32>, vector<2x8x8xf32>, vector<2x8x8xf32>, vector<2x8x8xf32> -> vector<8x8x8xf32>
    "tpu.trace_start"() <{level = 10 : i32, message = "bqd,bkd->bqk"}> : () -> ()
    %cst_64 = arith.constant dense<0.000000e+00> : vector<8x8x8xf32>
    %228 = tpu.matmul %207, %217, %cst_64 {dimension_numbers = #tpu.dot_dimension_numbers<[2], [2], [1], [1], [0, 0, 0, 1, 1, 1], [0], [0]>} : vector<8x8x8xf32>, vector<8x8x8xf32>, vector<8x8x8xf32> -> vector<8x8x8xf32>
    "tpu.trace_stop"() : () -> ()
    %cst_65 = arith.constant dense<0xFF800000> : vector<8x8xf32>
    %229 = vector.multi_reduction <maximumf>, %228, %cst_65 [2] : vector<8x8x8xf32> to vector<8x8xf32>
    %230 = vector.shape_cast %229 : vector<8x8xf32> to vector<8x8x1xf32>
    %231 = vector.broadcast %230 : vector<8x8x1xf32> to vector<8x8x8xf32>
    %232 = arith.subf %228, %231 : vector<8x8x8xf32>
    %233 = math.exp %232 : vector<8x8x8xf32>
    %cst_66 = arith.constant dense<0.000000e+00> : vector<8x8xf32>
    %234 = vector.multi_reduction <add>, %233, %cst_66 [2] : vector<8x8x8xf32> to vector<8x8xf32>
    %235 = vector.shape_cast %234 : vector<8x8xf32> to vector<8x8x1xf32>
    %236 = tpu.reciprocal %235 : vector<8x8x1xf32> -> vector<8x8x1xf32>
    %237 = vector.broadcast %236 : vector<8x8x1xf32> to vector<8x8x8xf32>
    %238 = arith.mulf %233, %237 : vector<8x8x8xf32>
    "tpu.trace_start"() <{level = 10 : i32, message = "bqk,bkd->bqd"}> : () -> ()
    %cst_67 = arith.constant dense<0.000000e+00> : vector<8x8x8xf32>
    %239 = tpu.matmul %238, %227, %cst_67 {dimension_numbers = #tpu.dot_dimension_numbers<[2], [1], [1], [2], [0, 0, 0, 1, 1, 2], [0], [0]>} : vector<8x8x8xf32>, vector<8x8x8xf32>, vector<8x8x8xf32> -> vector<8x8x8xf32>
    "tpu.trace_stop"() : () -> ()
    %240 = vector.extract_strided_slice %239 {offsets = [0, 0, 0], sizes = [2, 8, 8], strides = [1, 1, 1]} : vector<8x8x8xf32> to vector<2x8x8xf32>
    %241 = vector.shape_cast %240 : vector<2x8x8xf32> to vector<16x8xf32>
    %242 = vector.extract_strided_slice %239 {offsets = [2, 0, 0], sizes = [2, 8, 8], strides = [1, 1, 1]} : vector<8x8x8xf32> to vector<2x8x8xf32>
    %243 = vector.shape_cast %242 : vector<2x8x8xf32> to vector<16x8xf32>
    %244 = vector.extract_strided_slice %239 {offsets = [4, 0, 0], sizes = [2, 8, 8], strides = [1, 1, 1]} : vector<8x8x8xf32> to vector<2x8x8xf32>
    %245 = vector.shape_cast %244 : vector<2x8x8xf32> to vector<16x8xf32>
    %246 = vector.extract_strided_slice %239 {offsets = [6, 0, 0], sizes = [2, 8, 8], strides = [1, 1, 1]} : vector<8x8x8xf32> to vector<2x8x8xf32>
    %247 = vector.shape_cast %246 : vector<2x8x8xf32> to vector<16x8xf32>
    %248 = tpu.concatenate %241, %243, %245, %247 in 1 : vector<16x8xf32>, vector<16x8xf32>, vector<16x8xf32>, vector<16x8xf32> -> vector<16x32xf32>
    %c1_68 = arith.constant 1 : index
    %c0_69 = arith.constant 0 : index
    %c0_70 = arith.constant 0 : index
    %249 = vector.load %arg5[%c1_68, %c0_69, %c0_70] : memref<2x32x32xf32, #tpu.memory_space<vmem>>, vector<1x32x32xf32>
    %250 = vector.shape_cast %249 : vector<1x32x32xf32> to vector<32x32xf32>
    %cst_71 = arith.constant dense<0.000000e+00> : vector<16x32xf32>
    %251 = tpu.matmul %248, %250, %cst_71 {dimension_numbers = #tpu.dot_dimension_numbers<[1], [0], [0], [1], [0, 0, 1, 1], [], []>} : vector<16x32xf32>, vector<32x32xf32>, vector<16x32xf32> -> vector<16x32xf32>
    %c1_72 = arith.constant 1 : index
    %c0_73 = arith.constant 0 : index
    %c0_74 = arith.constant 0 : index
    %252 = vector.load %arg6[%c1_72, %c0_73, %c0_74] : memref<2x1x32xf32, #tpu.memory_space<vmem>>, vector<1x1x32xf32>
    %253 = vector.shape_cast %252 : vector<1x1x32xf32> to vector<1x32xf32>
    %254 = vector.broadcast %253 : vector<1x32xf32> to vector<16x32xf32>
    %255 = arith.addf %251, %254 : vector<16x32xf32>
    %256 = vector.shape_cast %255 : vector<16x32xf32> to vector<2x8x32xf32>
    %257 = vector.broadcast %162 : vector<2x1x32xf32> to vector<2x8x32xf32>
    %258 = arith.mulf %257, %256 : vector<2x8x32xf32>
    %259 = arith.addf %157, %258 : vector<2x8x32xf32>
    %cst_75 = arith.constant dense<0.000000e+00> : vector<2x8xf32>
    %260 = vector.multi_reduction <add>, %259, %cst_75 [2] : vector<2x8x32xf32> to vector<2x8xf32>
    %261 = vector.shape_cast %260 : vector<2x8xf32> to vector<2x8x1xf32>
    %cst_76 = arith.constant 3.200000e+01 : f32
    %262 = vector.broadcast %cst_76 : f32 to vector<2x8x1xf32>
    %263 = arith.divf %261, %262 : vector<2x8x1xf32>
    %264 = vector.broadcast %263 : vector<2x8x1xf32> to vector<2x8x32xf32>
    %265 = arith.subf %259, %264 : vector<2x8x32xf32>
    %266 = arith.mulf %265, %265 : vector<2x8x32xf32>
    %cst_77 = arith.constant dense<0.000000e+00> : vector<2x8xf32>
    %267 = vector.multi_reduction <add>, %266, %cst_77 [2] : vector<2x8x32xf32> to vector<2x8xf32>
    %268 = vector.shape_cast %267 : vector<2x8xf32> to vector<2x8x1xf32>
    %cst_78 = arith.constant 3.200000e+01 : f32
    %269 = vector.broadcast %cst_78 : f32 to vector<2x8x1xf32>
    %270 = arith.divf %268, %269 : vector<2x8x1xf32>
    %271 = vector.broadcast %263 : vector<2x8x1xf32> to vector<2x8x32xf32>
    %272 = arith.subf %259, %271 : vector<2x8x32xf32>
    %cst_79 = arith.constant 9.99999997E-7 : f32
    %273 = vector.broadcast %cst_79 : f32 to vector<2x8x1xf32>
    %274 = arith.addf %270, %273 : vector<2x8x1xf32>
    %275 = math.rsqrt %274 : vector<2x8x1xf32>
    %276 = vector.broadcast %275 : vector<2x8x1xf32> to vector<2x8x32xf32>
    %277 = arith.mulf %272, %276 : vector<2x8x32xf32>
    %278 = vector.broadcast %164 : vector<2x1x32xf32> to vector<2x8x32xf32>
    %279 = arith.mulf %277, %278 : vector<2x8x32xf32>
    %280 = vector.broadcast %163 : vector<2x1x32xf32> to vector<2x8x32xf32>
    %281 = arith.addf %279, %280 : vector<2x8x32xf32>
    %282 = vector.shape_cast %281 : vector<2x8x32xf32> to vector<16x32xf32>
    %c1_80 = arith.constant 1 : index
    %c0_81 = arith.constant 0 : index
    %c0_82 = arith.constant 0 : index
    %283 = vector.load %arg7[%c1_80, %c0_81, %c0_82] : memref<2x32x128xf32, #tpu.memory_space<vmem>>, vector<1x32x128xf32>
    %284 = vector.shape_cast %283 : vector<1x32x128xf32> to vector<32x128xf32>
    %cst_83 = arith.constant dense<0.000000e+00> : vector<16x128xf32>
    %285 = tpu.matmul %282, %284, %cst_83 {dimension_numbers = #tpu.dot_dimension_numbers<[1], [0], [0], [1], [0, 0, 1, 1], [], []>} : vector<16x32xf32>, vector<32x128xf32>, vector<16x128xf32> -> vector<16x128xf32>
    %c1_84 = arith.constant 1 : index
    %c0_85 = arith.constant 0 : index
    %c0_86 = arith.constant 0 : index
    %286 = vector.load %arg8[%c1_84, %c0_85, %c0_86] : memref<2x1x128xf32, #tpu.memory_space<vmem>>, vector<1x1x128xf32>
    %287 = vector.shape_cast %286 : vector<1x1x128xf32> to vector<1x128xf32>
    %288 = vector.broadcast %287 : vector<1x128xf32> to vector<16x128xf32>
    %289 = arith.addf %285, %288 : vector<16x128xf32>
    %cst_87 = arith.constant 5.000000e-01 : f32
    %290 = vector.broadcast %cst_87 : f32 to vector<16x128xf32>
    %291 = arith.mulf %290, %289 : vector<16x128xf32>
    %cst_88 = arith.constant 4.471500e-02 : f32
    %292 = vector.broadcast %cst_88 : f32 to vector<16x128xf32>
    %293 = arith.mulf %292, %289 : vector<16x128xf32>
    %294 = arith.mulf %293, %289 : vector<16x128xf32>
    %295 = arith.mulf %294, %289 : vector<16x128xf32>
    %296 = arith.addf %289, %295 : vector<16x128xf32>
    %cst_89 = arith.constant 0.797884583 : f32
    %297 = vector.broadcast %cst_89 : f32 to vector<16x128xf32>
    %298 = arith.mulf %297, %296 : vector<16x128xf32>
    %299 = math.tanh %298 : vector<16x128xf32>
    %cst_90 = arith.constant 1.000000e+00 : f32
    %300 = vector.broadcast %cst_90 : f32 to vector<16x128xf32>
    %301 = arith.addf %300, %299 : vector<16x128xf32>
    %302 = arith.mulf %291, %301 : vector<16x128xf32>
    %c1_91 = arith.constant 1 : index
    %c0_92 = arith.constant 0 : index
    %c0_93 = arith.constant 0 : index
    %303 = vector.load %arg9[%c1_91, %c0_92, %c0_93] : memref<2x128x32xf32, #tpu.memory_space<vmem>>, vector<1x128x32xf32>
    %304 = vector.shape_cast %303 : vector<1x128x32xf32> to vector<128x32xf32>
    %cst_94 = arith.constant dense<0.000000e+00> : vector<16x32xf32>
    %305 = tpu.matmul %302, %304, %cst_94 {dimension_numbers = #tpu.dot_dimension_numbers<[1], [0], [0], [1], [0, 0, 1, 1], [], []>} : vector<16x128xf32>, vector<128x32xf32>, vector<16x32xf32> -> vector<16x32xf32>
    %c1_95 = arith.constant 1 : index
    %c0_96 = arith.constant 0 : index
    %c0_97 = arith.constant 0 : index
    %306 = vector.load %arg10[%c1_95, %c0_96, %c0_97] : memref<2x1x32xf32, #tpu.memory_space<vmem>>, vector<1x1x32xf32>
    %307 = vector.shape_cast %306 : vector<1x1x32xf32> to vector<1x32xf32>
    %308 = vector.broadcast %307 : vector<1x32xf32> to vector<16x32xf32>
    %309 = arith.addf %305, %308 : vector<16x32xf32>
    %310 = vector.shape_cast %309 : vector<16x32xf32> to vector<2x8x32xf32>
    %311 = vector.broadcast %165 : vector<2x1x32xf32> to vector<2x8x32xf32>
    %312 = arith.mulf %311, %310 : vector<2x8x32xf32>
    %313 = arith.addf %259, %312 : vector<2x8x32xf32>
    %c0_98 = arith.constant 0 : index
    %c0_99 = arith.constant 0 : index
    %c0_100 = arith.constant 0 : index
    %314 = vector.load %arg2[%c0_98, %c0_99, %c0_100] : memref<2x2x32xf32, #tpu.memory_space<vmem>>, vector<2x2x32xf32>
    %cst_101 = arith.constant dense<0.000000e+00> : vector<2x8xf32>
    %315 = vector.multi_reduction <add>, %313, %cst_101 [2] : vector<2x8x32xf32> to vector<2x8xf32>
    %316 = vector.shape_cast %315 : vector<2x8xf32> to vector<2x8x1xf32>
    %cst_102 = arith.constant 3.200000e+01 : f32
    %317 = vector.broadcast %cst_102 : f32 to vector<2x8x1xf32>
    %318 = arith.divf %316, %317 : vector<2x8x1xf32>
    %319 = vector.broadcast %318 : vector<2x8x1xf32> to vector<2x8x32xf32>
    %320 = arith.subf %313, %319 : vector<2x8x32xf32>
    %321 = arith.mulf %320, %320 : vector<2x8x32xf32>
    %cst_103 = arith.constant dense<0.000000e+00> : vector<2x8xf32>
    %322 = vector.multi_reduction <add>, %321, %cst_103 [2] : vector<2x8x32xf32> to vector<2x8xf32>
    %323 = vector.shape_cast %322 : vector<2x8xf32> to vector<2x8x1xf32>
    %cst_104 = arith.constant 3.200000e+01 : f32
    %324 = vector.broadcast %cst_104 : f32 to vector<2x8x1xf32>
    %325 = arith.divf %323, %324 : vector<2x8x1xf32>
    %326 = vector.broadcast %318 : vector<2x8x1xf32> to vector<2x8x32xf32>
    %327 = arith.subf %313, %326 : vector<2x8x32xf32>
    %cst_105 = arith.constant 9.99999997E-7 : f32
    %328 = vector.broadcast %cst_105 : f32 to vector<2x8x1xf32>
    %329 = arith.addf %325, %328 : vector<2x8x1xf32>
    %330 = math.rsqrt %329 : vector<2x8x1xf32>
    %331 = vector.broadcast %330 : vector<2x8x1xf32> to vector<2x8x32xf32>
    %332 = arith.mulf %327, %331 : vector<2x8x32xf32>
    %333 = vector.extract_strided_slice %314 {offsets = [0, 1, 0], sizes = [2, 1, 32], strides = [1, 1, 1]} : vector<2x2x32xf32> to vector<2x1x32xf32>
    %334 = vector.broadcast %333 : vector<2x1x32xf32> to vector<2x8x32xf32>
    %335 = arith.mulf %332, %334 : vector<2x8x32xf32>
    %336 = vector.extract_strided_slice %314 {offsets = [0, 0, 0], sizes = [2, 1, 32], strides = [1, 1, 1]} : vector<2x2x32xf32> to vector<2x1x32xf32>
    %337 = vector.broadcast %336 : vector<2x1x32xf32> to vector<2x8x32xf32>
    %338 = arith.addf %335, %337 : vector<2x8x32xf32>
    %339 = vector.shape_cast %338 : vector<2x8x32xf32> to vector<16x32xf32>
    %c0_106 = arith.constant 0 : index
    %c0_107 = arith.constant 0 : index
    %340 = vector.load %arg11[%c0_106, %c0_107] : memref<32x128xf32, #tpu.memory_space<vmem>>, vector<32x128xf32>
    %cst_108 = arith.constant dense<0.000000e+00> : vector<16x128xf32>
    %341 = tpu.matmul %339, %340, %cst_108 {dimension_numbers = #tpu.dot_dimension_numbers<[1], [0], [0], [1], [0, 0, 1, 1], [], []>} : vector<16x32xf32>, vector<32x128xf32>, vector<16x128xf32> -> vector<16x128xf32>
    %c0_109 = arith.constant 0 : index
    %c0_110 = arith.constant 0 : index
    %342 = vector.load %arg12[%c0_109, %c0_110] : memref<1x128xf32, #tpu.memory_space<vmem>>, vector<1x128xf32>
    %343 = vector.broadcast %342 : vector<1x128xf32> to vector<16x128xf32>
    %344 = arith.addf %341, %343 : vector<16x128xf32>
    %345 = vector.shape_cast %344 : vector<16x128xf32> to vector<2x8x128xf32>
    %c0_111 = arith.constant 0 : index
    %c0_112 = arith.constant 0 : index
    %c0_113 = arith.constant 0 : index
    %346 = vector.load %arg13[%c0_111, %c0_112, %c0_113] : memref<2x8x128xf32, #tpu.memory_space<vmem>>, vector<2x8x128xf32>
    tpu.vector_store %arg13[%c0_111, %c0_112, %c0_113], %345 {strides = array<i32>} : memref<2x8x128xf32, #tpu.memory_space<vmem>>, vector<2x8x128xf32>,
    return
  }
}

</mosaic_0001>

<llo_original>
// kernel: dit1d_forward.1
$region0: #{dit1d_forward.1}
  #allocation0 [shape = 'u32[]', space=smem, size = 0x4, offset = 0x4, fixed_abs, tag = 'smem constant byte address 0x4 - core index']
  #allocation1 [shape = 'u32[72,128]{1,0:T(1,128)}', space=vmem, size = 0x9000, scoped, tag = 'internal scratch']
  %s0 = inlined_call_operand.vmem [shape: f32[2,8,32], index: 0, kind: input, shape index: {}]
  %s1 = inlined_call_operand.vmem [shape: f32[2,2,6,32], index: 1, kind: input, shape index: {}]
  %s2 = inlined_call_operand.vmem [shape: f32[2,2,32], index: 2, kind: input, shape index: {}]
  %s3 = inlined_call_operand.vmem [shape: f32[2,32,96], index: 3, kind: input, shape index: {}]
  %s4 = inlined_call_operand.vmem [shape: f32[2,1,96], index: 4, kind: input, shape index: {}]
  %s5 = inlined_call_operand.vmem [shape: f32[2,32,32], index: 5, kind: input, shape index: {}]
  %s6 = inlined_call_operand.vmem [shape: f32[2,1,32], index: 6, kind: input, shape index: {}]
  %s7 = inlined_call_operand.vmem [shape: f32[2,32,128], index: 7, kind: input, shape index: {}]
  %s8 = inlined_call_operand.vmem [shape: f32[2,1,128], index: 8, kind: input, shape index: {}]
  %s9 = inlined_call_operand.vmem [shape: f32[2,128,32], index: 9, kind: input, shape index: {}]
  %s10 = inlined_call_operand.vmem [shape: f32[2,1,32], index: 10, kind: input, shape index: {}]
  %s11 = inlined_call_operand.vmem [shape: f32[32,128], index: 11, kind: input, shape index: {}]
  %s12 = inlined_call_operand.vmem [shape: f32[1,128], index: 12, kind: input, shape index: {}]
  %s13 = inlined_call_operand.hbm [shape: f32[2,8,128], index: 13, kind: output, shape index: {}]
  %s14 = sld [smem:[#allocation0]]
  $region62: #{dit1d_forward.1} parent=0
    _
  %s16 = ssub.s32 1, %s14
  %s17 = scalar_select 0, %s16, %s14
  $region1: #{dit1d_forward.1} parent=0
    #allocation2 [shape = 'u8[8192]{0}', space=vmem, size = 0x2000, scoped, tag = 'output window, operand 0, single buffered']
    #allocation3 [shape = 's32[1]{0}', space=sflag, size = 0x4, scoped, tag = 'scoped memory for dit1d_forward.1']
    %18 = vsyncpa [#allocation3], 0
    // Predicated region
    $region2: #{dit1d_forward.1} parent=1 // pred_check
      _
    $region3: #{dit1d_forward.1} parent=1 // pred_check_branch
      %20 = sbr.rel (0) target = $region5
    $region4: #{dit1d_forward.1} parent=1 // pred_region
      _
    $region5: #{dit1d_forward.1} parent=1 // pred_fallthru
      _
    // Predicated region
    $region6: #{dit1d_forward.1} parent=1 // pred_check
      _
    $region7: #{dit1d_forward.1} parent=1 // pred_check_branch
      %22 = sbr.rel (0) target = $region9
    $region8: #{dit1d_forward.1} parent=1 // pred_region
      _
    $region9: #{dit1d_forward.1} parent=1 // pred_fallthru
      _
    // Predicated region
    $region10: #{dit1d_forward.1} parent=1 // pred_check
      _
    $region11: #{dit1d_forward.1} parent=1 // pred_check_branch
      %24 = sbr.rel (0) target = $region13
    $region12: #{dit1d_forward.1} parent=1 // pred_region
      _
    $region13: #{dit1d_forward.1} parent=1 // pred_fallthru
      _
    // Predicated region
    $region14: #{dit1d_forward.1} parent=1 // pred_check
      _
    $region15: #{dit1d_forward.1} parent=1 // pred_check_branch
      %26 = sbr.rel (0) target = $region17
    $region16: #{dit1d_forward.1} parent=1 // pred_region
      _
    $region17: #{dit1d_forward.1} parent=1 // pred_fallthru
      _
    // Predicated region
    $region18: #{dit1d_forward.1} parent=1 // pred_check
      _
    $region19: #{dit1d_forward.1} parent=1 // pred_check_branch
      %28 = sbr.rel (0) target = $region21
    $region20: #{dit1d_forward.1} parent=1 // pred_region
      _
    $region21: #{dit1d_forward.1} parent=1 // pred_fallthru
      _
    // Predicated region
    $region22: #{dit1d_forward.1} parent=1 // pred_check
      _
    $region23: #{dit1d_forward.1} parent=1 // pred_check_branch
      %30 = sbr.rel (0) target = $region25
    $region24: #{dit1d_forward.1} parent=1 // pred_region
      _
    $region25: #{dit1d_forward.1} parent=1 // pred_fallthru
      _
    // Predicated region
    $region26: #{dit1d_forward.1} parent=1 // pred_check
      _
    $region27: #{dit1d_forward.1} parent=1 // pred_check_branch
      %32 = sbr.rel (0) target = $region29
    $region28: #{dit1d_forward.1} parent=1 // pred_region
      _
    $region29: #{dit1d_forward.1} parent=1 // pred_fallthru
      _
    // Predicated region
    $region30: #{dit1d_forward.1} parent=1 // pred_check
      _
    $region31: #{dit1d_forward.1} parent=1 // pred_check_branch
      %34 = sbr.rel (0) target = $region33
    $region32: #{dit1d_forward.1} parent=1 // pred_region
      _
    $region33: #{dit1d_forward.1} parent=1 // pred_fallthru
      _
    // Predicated region
    $region34: #{dit1d_forward.1} parent=1 // pred_check
      _
    $region35: #{dit1d_forward.1} parent=1 // pred_check_branch
      %36 = sbr.rel (0) target = $region37
    $region36: #{dit1d_forward.1} parent=1 // pred_region
      _
    $region37: #{dit1d_forward.1} parent=1 // pred_fallthru
      _
    // Predicated region
    $region38: #{dit1d_forward.1} parent=1 // pred_check
      _
    $region39: #{dit1d_forward.1} parent=1 // pred_check_branch
      %38 = sbr.rel (0) target = $region41
    $region40: #{dit1d_forward.1} parent=1 // pred_region
      _
    $region41: #{dit1d_forward.1} parent=1 // pred_fallthru
      _
    // Predicated region
    $region42: #{dit1d_forward.1} parent=1 // pred_check
      _
    $region43: #{dit1d_forward.1} parent=1 // pred_check_branch
      %40 = sbr.rel (0) target = $region45
    $region44: #{dit1d_forward.1} parent=1 // pred_region
      _
    $region45: #{dit1d_forward.1} parent=1 // pred_fallthru
      _
    // Predicated region
    $region46: #{dit1d_forward.1} parent=1 // pred_check
      _
    $region47: #{dit1d_forward.1} parent=1 // pred_check_branch
      %42 = sbr.rel (0) target = $region49
    $region48: #{dit1d_forward.1} parent=1 // pred_region
      _
    $region49: #{dit1d_forward.1} parent=1 // pred_fallthru
      _
    // Predicated region
    $region50: #{dit1d_forward.1} parent=1 // pred_check
      _
    $region51: #{dit1d_forward.1} parent=1 // pred_check_branch
      %44 = sbr.rel (0) target = $region53
    $region52: #{dit1d_forward.1} parent=1 // pred_region
      _
    $region53: #{dit1d_forward.1} parent=1 // pred_fallthru
      _
    %v45 = vld [vmem:[%s0] sm:$0xff]
    %v46 = vld [vmem:[%s0 + $0x8] sm:$0xff]
    %v47 = vld [vmem:[%s1] sm:$0x3f]
    %v48 = vld [vmem:[%s1 + $0x8] sm:$0x3f]
    %v49 = vld [vmem:[%s1 + $0x10] sm:$0x3f]
    %v50 = vld [vmem:[%s1 + $0x18] sm:$0x3f]
    %vm51 = vcmask 261120
    %v52 = vsel %vm51, %v45, 0.0
    %53 = vadd.xlane.f32.xlu0 %v52
    %v54 = vpop.xlane.xlu0 %53
    %v55 = vsel %vm51, %v46, 0.0
    %56 = vadd.xlane.f32.xlu0 %v55
    %v57 = vpop.xlane.xlu0 %56
    %v58 = vrcp.pop 32.0
    %v59 = vmul.f32 32.0, %v58
    %v60 = vsub.f32 1.0, %v59
    %v61 = vmul.f32 %v58, %v60
    %v62 = vadd.f32 %v58, %v61
    %vm63 = vweird.f32 %v58
    %v64 = vsel %vm63, %v58, %v62
    %v65 = vmul.f32 %v54, %v64
    %v66 = vmul.f32 %v57, %v64
    %v67 = vsub.f32 %v45, %v65
    %v68 = vsub.f32 %v46, %v66
    %v69 = vmul.f32 %v67, %v67
    %v70 = vmul.f32 %v68, %v68
    %v71 = vsel %vm51, %v69, 0.0
    %72 = vadd.xlane.f32.xlu0 %v71
    %v73 = vpop.xlane.xlu0 %72
    %v74 = vsel %vm51, %v70, 0.0
    %75 = vadd.xlane.f32.xlu0 %v74
    %v76 = vpop.xlane.xlu0 %75
    %v77 = vmul.f32 %v73, %v64
    %v78 = vmul.f32 %v76, %v64
    %v79 = vadd.f32 %v77, 1e-06
    %v80 = vadd.f32 %v78, 1e-06
    %v81 = vrsqrt.pop %v79
    %v82 = vmul.f32 %v81, %v79
    %v83 = vmul.f32 %v82, %v81
    %v84 = vmul.f32 0.5, %v83
    %v85 = vsub.f32 1.5, %v84
    %v86 = vmul.f32 %v81, %v85
    %vm87 = vweird.f32 %v79
    %vm88 = vweird.f32 %v81
    %vm89 = vmor %vm87, %vm88
    %v90 = vsel %vm89, %v81, %v86
    %v91 = vrsqrt.pop %v80
    %v92 = vmul.f32 %v91, %v80
    %v93 = vmul.f32 %v92, %v91
    %v94 = vmul.f32 0.5, %v93
    %v95 = vsub.f32 1.5, %v94
    %v96 = vmul.f32 %v91, %v95
    %vm97 = vweird.f32 %v80
    %vm98 = vweird.f32 %v91
    %vm99 = vmor %vm97, %vm98
    %v100 = vsel %vm99, %v91, %v96
    %v101 = vmul.f32 %v67, %v90
    %v102 = vmul.f32 %v68, %v100
    %v103 = vperm.slane %v47, 1
    %v104 = vperm.slane %v49, 1
    %v105 = vmul.f32 %v101, %v103
    %v106 = vmul.f32 %v102, %v104
    %v107 = vperm.slane %v47, 0
    %v108 = vperm.slane %v49, 0
    %v109 = vadd.f32 %v105, %v107
    %v110 = vadd.f32 %v106, %v108
    %v111 = vld [vmem:[%s3] sm:$0xff]
    %v112 = vld [vmem:[%s3 + $0x8] sm:$0xff]
    %v113 = vld [vmem:[%s3 + $0x10] sm:$0xff]
    %v114 = vld [vmem:[%s3 + $0x18] sm:$0xff]
    %v115 = vld [vmem:[%s4] sm:$0x1]
    %v117 = vperm.slane %v115, 0
    %v120 = vsel %vm51, %v109, 0
    %v123 = vsel %vm51, %v110, 0
    %125 = vmatpush.msra.mxu0 0.0
    %126 = vmatpush.msra.mxu0 0.0
    %127 = vmatpush.msra.mxu0 0.0
    %128 = vmatpush.msra.mxu0 0.0
    %129 = vmatpush.msra.mxu0 0.0
    %130 = vmatpush.msra.mxu0 0.0
    %131 = vmatpush.msra.mxu0 0.0
    %132 = vmatpush.msra.mxu0 0.0
    %133 = vmatpush.msra.mxu0 0.0
    %134 = vmatpush.msra.mxu0 0.0
    %135 = vmatpush.msra.mxu0 0.0
    %136 = vmatpush.msra.mxu0 0.0
    %137 = vmatpush.msra.mxu0 %v114
    %138 = vmatpush.msra.mxu0 %v113
    %139 = vmatpush.msra.mxu0 %v112
    %140 = vmatpush.msra.mxu0 %v111
    %141 = vmatmul.f32.gmra.mxu0 %v120
    %v142 = vpop.f32.mrf.mxu0
    %v143 = vadd.f32 %v117, %v142
    %144 = vmatmul.f32.gmra.mxu0 %v123
    %v145 = vpop.f32.mrf.mxu0
    %v146 = vadd.f32 %v117, %v145
    %147 = vdwg.mxu0
    %150 = vrot.lane.b32.xlu0 %v143, 120
    %v151 = vpop.permute.xlu0 %150
    %152 = vrot.lane.b32.xlu0 %v146, 120
    %v153 = vpop.permute.xlu0 %152
    %156 = vrot.lane.b32.xlu0 %v143, 112
    %v157 = vpop.permute.xlu0 %156
    %158 = vrot.lane.b32.xlu0 %v146, 112
    %v159 = vpop.permute.xlu0 %158
    %162 = vrot.lane.b32.xlu0 %v143, 104
    %v163 = vpop.permute.xlu0 %162
    %164 = vrot.lane.b32.xlu0 %v146, 104
    %v165 = vpop.permute.xlu0 %164
    %v168 = vmul.f32 %v143, 0.35355338
    %v169 = vmul.f32 %v146, 0.35355338
    %v170 = vmul.f32 %v151, 0.35355338
    %v171 = vmul.f32 %v153, 0.35355338
    %v172 = vmul.f32 %v157, 0.35355338
    %v173 = vmul.f32 %v159, 0.35355338
    %v174 = vmul.f32 %v163, 0.35355338
    %v175 = vmul.f32 %v165, 0.35355338
    %176 = vrot.lane.b32.xlu0 %v143, 96
    %v177 = vpop.permute.xlu0 %176
    %vm178 = vcmask 64512
    %v180 = vsel %vm178, %v168, 0
    %v182 = vsel %vm178, %v177, 0
    %184 = vmatpush.xpose.msra.mxu0 0.0
    %185 = vmatpush.xpose.msra.mxu0 0.0
    %186 = vmatpush.xpose.msra.mxu0 0.0
    %187 = vmatpush.xpose.msra.mxu0 0.0
    %188 = vmatpush.xpose.msra.mxu0 0.0
    %189 = vmatpush.xpose.msra.mxu0 0.0
    %190 = vmatpush.xpose.msra.mxu0 0.0
    %191 = vmatpush.xpose.msra.mxu0 0.0
    %192 = vmatpush.xpose.msra.mxu0 0.0
    %193 = vmatpush.xpose.msra.mxu0 0.0
    %194 = vmatpush.xpose.msra.mxu0 0.0
    %195 = vmatpush.xpose.msra.mxu0 0.0
    %196 = vmatpush.xpose.msra.mxu0 0.0
    %197 = vmatpush.xpose.msra.mxu0 0.0
    %198 = vmatpush.xpose.msra.mxu0 0.0
    %199 = vmatpush.xpose.msra.mxu0 %v182
    %200 = vmatmul.f32.gmra.mxu0 %v180
    %v201 = vpop.f32.mrf.mxu0
    %v202 = vadd.f32 0.0, %v201
    %203 = vdwg.mxu0
    %204 = vrot.lane.b32.xlu0 %v146, 96
    %v205 = vpop.permute.xlu0 %204
    %v207 = vsel %vm178, %v169, 0
    %v209 = vsel %vm178, %v205, 0
    %211 = vmatpush.xpose.msra.mxu0 0.0
    %212 = vmatpush.xpose.msra.mxu0 0.0
    %213 = vmatpush.xpose.msra.mxu0 0.0
    %214 = vmatpush.xpose.msra.mxu0 0.0
    %215 = vmatpush.xpose.msra.mxu0 0.0
    %216 = vmatpush.xpose.msra.mxu0 0.0
    %217 = vmatpush.xpose.msra.mxu0 0.0
    %218 = vmatpush.xpose.msra.mxu0 0.0
    %219 = vmatpush.xpose.msra.mxu0 0.0
    %220 = vmatpush.xpose.msra.mxu0 0.0
    %221 = vmatpush.xpose.msra.mxu0 0.0
    %222 = vmatpush.xpose.msra.mxu0 0.0
    %223 = vmatpush.xpose.msra.mxu0 0.0
    %224 = vmatpush.xpose.msra.mxu0 0.0
    %225 = vmatpush.xpose.msra.mxu0 0.0
    %226 = vmatpush.xpose.msra.mxu0 %v209
    %227 = vmatmul.f32.gmra.mxu0 %v207
    %v228 = vpop.f32.mrf.mxu0
    %v229 = vadd.f32 0.0, %v228
    %230 = vdwg.mxu0
    %231 = vrot.lane.b32.xlu0 %v151, 96
    %v232 = vpop.permute.xlu0 %231
    %v234 = vsel %vm178, %v170, 0
    %v236 = vsel %vm178, %v232, 0
    %238 = vmatpush.xpose.msra.mxu0 0.0
    %239 = vmatpush.xpose.msra.mxu0 0.0
    %240 = vmatpush.xpose.msra.mxu0 0.0
    %241 = vmatpush.xpose.msra.mxu0 0.0
    %242 = vmatpush.xpose.msra.mxu0 0.0
    %243 = vmatpush.xpose.msra.mxu0 0.0
    %244 = vmatpush.xpose.msra.mxu0 0.0
    %245 = vmatpush.xpose.msra.mxu0 0.0
    %246 = vmatpush.xpose.msra.mxu0 0.0
    %247 = vmatpush.xpose.msra.mxu0 0.0
    %248 = vmatpush.xpose.msra.mxu0 0.0
    %249 = vmatpush.xpose.msra.mxu0 0.0
    %250 = vmatpush.xpose.msra.mxu0 0.0
    %251 = vmatpush.xpose.msra.mxu0 0.0
    %252 = vmatpush.xpose.msra.mxu0 0.0
    %253 = vmatpush.xpose.msra.mxu0 %v236
    %254 = vmatmul.f32.gmra.mxu0 %v234
    %v255 = vpop.f32.mrf.mxu0
    %v256 = vadd.f32 0.0, %v255
    %257 = vdwg.mxu0
    %258 = vrot.lane.b32.xlu0 %v153, 96
    %v259 = vpop.permute.xlu0 %258
    %v261 = vsel %vm178, %v171, 0
    %v263 = vsel %vm178, %v259, 0
    %265 = vmatpush.xpose.msra.mxu0 0.0
    %266 = vmatpush.xpose.msra.mxu0 0.0
    %267 = vmatpush.xpose.msra.mxu0 0.0
    %268 = vmatpush.xpose.msra.mxu0 0.0
    %269 = vmatpush.xpose.msra.mxu0 0.0
    %270 = vmatpush.xpose.msra.mxu0 0.0
    %271 = vmatpush.xpose.msra.mxu0 0.0
    %272 = vmatpush.xpose.msra.mxu0 0.0
    %273 = vmatpush.xpose.msra.mxu0 0.0
    %274 = vmatpush.xpose.msra.mxu0 0.0
    %275 = vmatpush.xpose.msra.mxu0 0.0
    %276 = vmatpush.xpose.msra.mxu0 0.0
    %277 = vmatpush.xpose.msra.mxu0 0.0
    %278 = vmatpush.xpose.msra.mxu0 0.0
    %279 = vmatpush.xpose.msra.mxu0 0.0
    %280 = vmatpush.xpose.msra.mxu0 %v263
    %281 = vmatmul.f32.gmra.mxu0 %v261
    %v282 = vpop.f32.mrf.mxu0
    %v283 = vadd.f32 0.0, %v282
    %284 = vdwg.mxu0
    %285 = vrot.lane.b32.xlu0 %v157, 96
    %v286 = vpop.permute.xlu0 %285
    %v288 = vsel %vm178, %v172, 0
    %v290 = vsel %vm178, %v286, 0
    %292 = vmatpush.xpose.msra.mxu0 0.0
    %293 = vmatpush.xpose.msra.mxu0 0.0
    %294 = vmatpush.xpose.msra.mxu0 0.0
    %295 = vmatpush.xpose.msra.mxu0 0.0
    %296 = vmatpush.xpose.msra.mxu0 0.0
    %297 = vmatpush.xpose.msra.mxu0 0.0
    %298 = vmatpush.xpose.msra.mxu0 0.0
    %299 = vmatpush.xpose.msra.mxu0 0.0
    %300 = vmatpush.xpose.msra.mxu0 0.0
    %301 = vmatpush.xpose.msra.mxu0 0.0
    %302 = vmatpush.xpose.msra.mxu0 0.0
    %303 = vmatpush.xpose.msra.mxu0 0.0
    %304 = vmatpush.xpose.msra.mxu0 0.0
    %305 = vmatpush.xpose.msra.mxu0 0.0
    %306 = vmatpush.xpose.msra.mxu0 0.0
    %307 = vmatpush.xpose.msra.mxu0 %v290
    %308 = vmatmul.f32.gmra.mxu0 %v288
    %v309 = vpop.f32.mrf.mxu0
    %v310 = vadd.f32 0.0, %v309
    %311 = vdwg.mxu0
    %312 = vrot.lane.b32.xlu0 %v159, 96
    %v313 = vpop.permute.xlu0 %312
    %v315 = vsel %vm178, %v173, 0
    %v317 = vsel %vm178, %v313, 0
    %319 = vmatpush.xpose.msra.mxu0 0.0
    %320 = vmatpush.xpose.msra.mxu0 0.0
    %321 = vmatpush.xpose.msra.mxu0 0.0
    %322 = vmatpush.xpose.msra.mxu0 0.0
    %323 = vmatpush.xpose.msra.mxu0 0.0
    %324 = vmatpush.xpose.msra.mxu0 0.0
    %325 = vmatpush.xpose.msra.mxu0 0.0
    %326 = vmatpush.xpose.msra.mxu0 0.0
    %327 = vmatpush.xpose.msra.mxu0 0.0
    %328 = vmatpush.xpose.msra.mxu0 0.0
    %329 = vmatpush.xpose.msra.mxu0 0.0
    %330 = vmatpush.xpose.msra.mxu0 0.0
    %331 = vmatpush.xpose.msra.mxu0 0.0
    %332 = vmatpush.xpose.msra.mxu0 0.0
    %333 = vmatpush.xpose.msra.mxu0 0.0
    %334 = vmatpush.xpose.msra.mxu0 %v317
    %335 = vmatmul.f32.gmra.mxu0 %v315
    %v336 = vpop.f32.mrf.mxu0
    %v337 = vadd.f32 0.0, %v336
    %338 = vdwg.mxu0
    %339 = vrot.lane.b32.xlu0 %v163, 96
    %v340 = vpop.permute.xlu0 %339
    %v342 = vsel %vm178, %v174, 0
    %v344 = vsel %vm178, %v340, 0
    %346 = vmatpush.xpose.msra.mxu0 0.0
    %347 = vmatpush.xpose.msra.mxu0 0.0
    %348 = vmatpush.xpose.msra.mxu0 0.0
    %349 = vmatpush.xpose.msra.mxu0 0.0
    %350 = vmatpush.xpose.msra.mxu0 0.0
    %351 = vmatpush.xpose.msra.mxu0 0.0
    %352 = vmatpush.xpose.msra.mxu0 0.0
    %353 = vmatpush.xpose.msra.mxu0 0.0
    %354 = vmatpush.xpose.msra.mxu0 0.0
    %355 = vmatpush.xpose.msra.mxu0 0.0
    %356 = vmatpush.xpose.msra.mxu0 0.0
    %357 = vmatpush.xpose.msra.mxu0 0.0
    %358 = vmatpush.xpose.msra.mxu0 0.0
    %359 = vmatpush.xpose.msra.mxu0 0.0
    %360 = vmatpush.xpose.msra.mxu0 0.0
    %361 = vmatpush.xpose.msra.mxu0 %v344
    %362 = vmatmul.f32.gmra.mxu0 %v342
    %v363 = vpop.f32.mrf.mxu0
    %v364 = vadd.f32 0.0, %v363
    %365 = vdwg.mxu0
    %366 = vrot.lane.b32.xlu0 %v165, 96
    %v367 = vpop.permute.xlu0 %366
    %v369 = vsel %vm178, %v175, 0
    %v371 = vsel %vm178, %v367, 0
    %373 = vmatpush.xpose.msra.mxu0 0.0
    %374 = vmatpush.xpose.msra.mxu0 0.0
    %375 = vmatpush.xpose.msra.mxu0 0.0
    %376 = vmatpush.xpose.msra.mxu0 0.0
    %377 = vmatpush.xpose.msra.mxu0 0.0
    %378 = vmatpush.xpose.msra.mxu0 0.0
    %379 = vmatpush.xpose.msra.mxu0 0.0
    %380 = vmatpush.xpose.msra.mxu0 0.0
    %381 = vmatpush.xpose.msra.mxu0 0.0
    %382 = vmatpush.xpose.msra.mxu0 0.0
    %383 = vmatpush.xpose.msra.mxu0 0.0
    %384 = vmatpush.xpose.msra.mxu0 0.0
    %385 = vmatpush.xpose.msra.mxu0 0.0
    %386 = vmatpush.xpose.msra.mxu0 0.0
    %387 = vmatpush.xpose.msra.mxu0 0.0
    %388 = vmatpush.xpose.msra.mxu0 %v371
    %389 = vmatmul.f32.gmra.mxu0 %v369
    %v390 = vpop.f32.mrf.mxu0
    %v391 = vadd.f32 0.0, %v390
    %392 = vdwg.mxu0
    %v393 = vsel %vm178, %v202, -inf
    %394 = vmax.xlane.f32.xlu0 %v393
    %v395 = vpop.xlane.xlu0 %394
    %v396 = vsel %vm178, %v229, -inf
    %397 = vmax.xlane.f32.xlu0 %v396
    %v398 = vpop.xlane.xlu0 %397
    %v399 = vsel %vm178, %v256, -inf
    %400 = vmax.xlane.f32.xlu0 %v399
    %v401 = vpop.xlane.xlu0 %400
    %v402 = vsel %vm178, %v283, -inf
    %403 = vmax.xlane.f32.xlu0 %v402
    %v404 = vpop.xlane.xlu0 %403
    %v405 = vsel %vm178, %v310, -inf
    %406 = vmax.xlane.f32.xlu0 %v405
    %v407 = vpop.xlane.xlu0 %406
    %v408 = vsel %vm178, %v337, -inf
    %409 = vmax.xlane.f32.xlu0 %v408
    %v410 = vpop.xlane.xlu0 %409
    %v411 = vsel %vm178, %v364, -inf
    %412 = vmax.xlane.f32.xlu0 %v411
    %v413 = vpop.xlane.xlu0 %412
    %v414 = vsel %vm178, %v391, -inf
    %415 = vmax.xlane.f32.xlu0 %v414
    %v416 = vpop.xlane.xlu0 %415
    %v417 = vsub.f32 %v202, %v395
    %v418 = vsub.f32 %v229, %v398
    %v419 = vsub.f32 %v256, %v401
    %v420 = vsub.f32 %v283, %v404
    %v421 = vsub.f32 %v310, %v407
    %v422 = vsub.f32 %v337, %v410
    %v423 = vsub.f32 %v364, %v413
    %v424 = vsub.f32 %v391, %v416
    %v425 = vmul.f32 %v417, 1.442695
    %v426 = vpow.pop %v425
    %v427 = vmul.f32 %v418, 1.442695
    %v428 = vpow.pop %v427
    %v429 = vmul.f32 %v419, 1.442695
    %v430 = vpow.pop %v429
    %v431 = vmul.f32 %v420, 1.442695
    %v432 = vpow.pop %v431
    %v433 = vmul.f32 %v421, 1.442695
    %v434 = vpow.pop %v433
    %v435 = vmul.f32 %v422, 1.442695
    %v436 = vpow.pop %v435
    %v437 = vmul.f32 %v423, 1.442695
    %v438 = vpow.pop %v437
    %v439 = vmul.f32 %v424, 1.442695
    %v440 = vpow.pop %v439
    %v441 = vsel %vm178, %v426, 0.0
    %442 = vadd.xlane.f32.xlu0 %v441
    %v443 = vpop.xlane.xlu0 %442
    %v444 = vsel %vm178, %v428, 0.0
    %445 = vadd.xlane.f32.xlu0 %v444
    %v446 = vpop.xlane.xlu0 %445
    %v447 = vsel %vm178, %v430, 0.0
    %448 = vadd.xlane.f32.xlu0 %v447
    %v449 = vpop.xlane.xlu0 %448
    %v450 = vsel %vm178, %v432, 0.0
    %451 = vadd.xlane.f32.xlu0 %v450
    %v452 = vpop.xlane.xlu0 %451
    %v453 = vsel %vm178, %v434, 0.0
    %454 = vadd.xlane.f32.xlu0 %v453
    %v455 = vpop.xlane.xlu0 %454
    %v456 = vsel %vm178, %v436, 0.0
    %457 = vadd.xlane.f32.xlu0 %v456
    %v458 = vpop.xlane.xlu0 %457
    %v459 = vsel %vm178, %v438, 0.0
    %460 = vadd.xlane.f32.xlu0 %v459
    %v461 = vpop.xlane.xlu0 %460
    %v462 = vsel %vm178, %v440, 0.0
    %463 = vadd.xlane.f32.xlu0 %v462
    %v464 = vpop.xlane.xlu0 %463
    %v465 = vrcp.pop %v443
    %v466 = vmul.f32 %v443, %v465
    %v467 = vsub.f32 1.0, %v466
    %v468 = vmul.f32 %v465, %v467
    %v469 = vadd.f32 %v465, %v468
    %vm470 = vweird.f32 %v443
    %vm471 = vweird.f32 %v465
    %vm472 = vmor %vm470, %vm471
    %v473 = vsel %vm472, %v465, %v469
    %v474 = vand.u32 2147483647, %v443
    %vm475 = vcmp.eq.f32.partialorder %v474, 8.507059e+37
    %v476 = vand.u32 %v443, 2147483648
    %v477 = vor.u32 1.1754944e-38, %v476
    %v478 = vsel %vm475, %v477, %v473
    %v479 = vrcp.pop %v446
    %v480 = vmul.f32 %v446, %v479
    %v481 = vsub.f32 1.0, %v480
    %v482 = vmul.f32 %v479, %v481
    %v483 = vadd.f32 %v479, %v482
    %vm484 = vweird.f32 %v446
    %vm485 = vweird.f32 %v479
    %vm486 = vmor %vm484, %vm485
    %v487 = vsel %vm486, %v479, %v483
    %v488 = vand.u32 2147483647, %v446
    %vm489 = vcmp.eq.f32.partialorder %v488, 8.507059e+37
    %v490 = vand.u32 %v446, 2147483648
    %v491 = vor.u32 1.1754944e-38, %v490
    %v492 = vsel %vm489, %v491, %v487
    %v493 = vrcp.pop %v449
    %v494 = vmul.f32 %v449, %v493
    %v495 = vsub.f32 1.0, %v494
    %v496 = vmul.f32 %v493, %v495
    %v497 = vadd.f32 %v493, %v496
    %vm498 = vweird.f32 %v449
    %vm499 = vweird.f32 %v493
    %vm500 = vmor %vm498, %vm499
    %v501 = vsel %vm500, %v493, %v497
    %v502 = vand.u32 2147483647, %v449
    %vm503 = vcmp.eq.f32.partialorder %v502, 8.507059e+37
    %v504 = vand.u32 %v449, 2147483648
    %v505 = vor.u32 1.1754944e-38, %v504
    %v506 = vsel %vm503, %v505, %v501
    %v507 = vrcp.pop %v452
    %v508 = vmul.f32 %v452, %v507
    %v509 = vsub.f32 1.0, %v508
    %v510 = vmul.f32 %v507, %v509
    %v511 = vadd.f32 %v507, %v510
    %vm512 = vweird.f32 %v452
    %vm513 = vweird.f32 %v507
    %vm514 = vmor %vm512, %vm513
    %v515 = vsel %vm514, %v507, %v511
    %v516 = vand.u32 2147483647, %v452
    %vm517 = vcmp.eq.f32.partialorder %v516, 8.507059e+37
    %v518 = vand.u32 %v452, 2147483648
    %v519 = vor.u32 1.1754944e-38, %v518
    %v520 = vsel %vm517, %v519, %v515
    %v521 = vrcp.pop %v455
    %v522 = vmul.f32 %v455, %v521
    %v523 = vsub.f32 1.0, %v522
    %v524 = vmul.f32 %v521, %v523
    %v525 = vadd.f32 %v521, %v524
    %vm526 = vweird.f32 %v455
    %vm527 = vweird.f32 %v521
    %vm528 = vmor %vm526, %vm527
    %v529 = vsel %vm528, %v521, %v525
    %v530 = vand.u32 2147483647, %v455
    %vm531 = vcmp.eq.f32.partialorder %v530, 8.507059e+37
    %v532 = vand.u32 %v455, 2147483648
    %v533 = vor.u32 1.1754944e-38, %v532
    %v534 = vsel %vm531, %v533, %v529
    %v535 = vrcp.pop %v458
    %v536 = vmul.f32 %v458, %v535
    %v537 = vsub.f32 1.0, %v536
    %v538 = vmul.f32 %v535, %v537
    %v539 = vadd.f32 %v535, %v538
    %vm540 = vweird.f32 %v458
    %vm541 = vweird.f32 %v535
    %vm542 = vmor %vm540, %vm541
    %v543 = vsel %vm542, %v535, %v539
    %v544 = vand.u32 2147483647, %v458
    %vm545 = vcmp.eq.f32.partialorder %v544, 8.507059e+37
    %v546 = vand.u32 %v458, 2147483648
    %v547 = vor.u32 1.1754944e-38, %v546
    %v548 = vsel %vm545, %v547, %v543
    %v549 = vrcp.pop %v461
    %v550 = vmul.f32 %v461, %v549
    %v551 = vsub.f32 1.0, %v550
    %v552 = vmul.f32 %v549, %v551
    %v553 = vadd.f32 %v549, %v552
    %vm554 = vweird.f32 %v461
    %vm555 = vweird.f32 %v549
    %vm556 = vmor %vm554, %vm555
    %v557 = vsel %vm556, %v549, %v553
    %v558 = vand.u32 2147483647, %v461
    %vm559 = vcmp.eq.f32.partialorder %v558, 8.507059e+37
    %v560 = vand.u32 %v461, 2147483648
    %v561 = vor.u32 1.1754944e-38, %v560
    %v562 = vsel %vm559, %v561, %v557
    %v563 = vrcp.pop %v464
    %v564 = vmul.f32 %v464, %v563
    %v565 = vsub.f32 1.0, %v564
    %v566 = vmul.f32 %v563, %v565
    %v567 = vadd.f32 %v563, %v566
    %vm568 = vweird.f32 %v464
    %vm569 = vweird.f32 %v563
    %vm570 = vmor %vm568, %vm569
    %v571 = vsel %vm570, %v563, %v567
    %v572 = vand.u32 2147483647, %v464
    %vm573 = vcmp.eq.f32.partialorder %v572, 8.507059e+37
    %v574 = vand.u32 %v464, 2147483648
    %v575 = vor.u32 1.1754944e-38, %v574
    %v576 = vsel %vm573, %v575, %v571
    %v577 = vmul.f32 %v426, %v478
    %v578 = vmul.f32 %v428, %v492
    %v579 = vmul.f32 %v430, %v506
    %v580 = vmul.f32 %v432, %v520
    %v581 = vmul.f32 %v434, %v534
    %v582 = vmul.f32 %v436, %v548
    %v583 = vmul.f32 %v438, %v562
    %v584 = vmul.f32 %v440, %v576
    %585 = vrot.lane.b32.xlu0 %v143, 64
    %v586 = vpop.permute.xlu0 %585
    %v589 = vsel %vm178, %v577, 0
    %591 = vmatpush.msra.mxu0 0.0
    %592 = vmatpush.msra.mxu0 0.0
    %593 = vmatpush.msra.mxu0 0.0
    %594 = vmatpush.msra.mxu0 0.0
    %595 = vmatpush.msra.mxu0 0.0
    %596 = vmatpush.msra.mxu0 0.0
    %597 = vmatpush.msra.mxu0 0.0
    %598 = vmatpush.msra.mxu0 0.0
    %599 = vmatpush.msra.mxu0 0.0
    %600 = vmatpush.msra.mxu0 0.0
    %601 = vmatpush.msra.mxu0 0.0
    %602 = vmatpush.msra.mxu0 0.0
    %603 = vmatpush.msra.mxu0 0.0
    %604 = vmatpush.msra.mxu0 0.0
    %605 = vmatpush.msra.mxu0 0.0
    %606 = vmatpush.msra.mxu0 %v586
    %607 = vmatmul.f32.gmra.mxu0 %v589
    %v608 = vpop.f32.mrf.mxu0
    %v609 = vadd.f32 0.0, %v608
    %610 = vdwg.mxu0
    %611 = vrot.lane.b32.xlu0 %v146, 64
    %v612 = vpop.permute.xlu0 %611
    %v615 = vsel %vm178, %v578, 0
    %617 = vmatpush.msra.mxu0 0.0
    %618 = vmatpush.msra.mxu0 0.0
    %619 = vmatpush.msra.mxu0 0.0
    %620 = vmatpush.msra.mxu0 0.0
    %621 = vmatpush.msra.mxu0 0.0
    %622 = vmatpush.msra.mxu0 0.0
    %623 = vmatpush.msra.mxu0 0.0
    %624 = vmatpush.msra.mxu0 0.0
    %625 = vmatpush.msra.mxu0 0.0
    %626 = vmatpush.msra.mxu0 0.0
    %627 = vmatpush.msra.mxu0 0.0
    %628 = vmatpush.msra.mxu0 0.0
    %629 = vmatpush.msra.mxu0 0.0
    %630 = vmatpush.msra.mxu0 0.0
    %631 = vmatpush.msra.mxu0 0.0
    %632 = vmatpush.msra.mxu0 %v612
    %633 = vmatmul.f32.gmra.mxu0 %v615
    %v634 = vpop.f32.mrf.mxu0
    %v635 = vadd.f32 0.0, %v634
    %636 = vdwg.mxu0
    %637 = vrot.lane.b32.xlu0 %v151, 64
    %v638 = vpop.permute.xlu0 %637
    %v641 = vsel %vm178, %v579, 0
    %643 = vmatpush.msra.mxu0 0.0
    %644 = vmatpush.msra.mxu0 0.0
    %645 = vmatpush.msra.mxu0 0.0
    %646 = vmatpush.msra.mxu0 0.0
    %647 = vmatpush.msra.mxu0 0.0
    %648 = vmatpush.msra.mxu0 0.0
    %649 = vmatpush.msra.mxu0 0.0
    %650 = vmatpush.msra.mxu0 0.0
    %651 = vmatpush.msra.mxu0 0.0
    %652 = vmatpush.msra.mxu0 0.0
    %653 = vmatpush.msra.mxu0 0.0
    %654 = vmatpush.msra.mxu0 0.0
    %655 = vmatpush.msra.mxu0 0.0
    %656 = vmatpush.msra.mxu0 0.0
    %657 = vmatpush.msra.mxu0 0.0
    %658 = vmatpush.msra.mxu0 %v638
    %659 = vmatmul.f32.gmra.mxu0 %v641
    %v660 = vpop.f32.mrf.mxu0
    %v661 = vadd.f32 0.0, %v660
    %662 = vdwg.mxu0
    %663 = vrot.lane.b32.xlu0 %v153, 64
    %v664 = vpop.permute.xlu0 %663
    %v667 = vsel %vm178, %v580, 0
    %669 = vmatpush.msra.mxu0 0.0
    %670 = vmatpush.msra.mxu0 0.0
    %671 = vmatpush.msra.mxu0 0.0
    %672 = vmatpush.msra.mxu0 0.0
    %673 = vmatpush.msra.mxu0 0.0
    %674 = vmatpush.msra.mxu0 0.0
    %675 = vmatpush.msra.mxu0 0.0
    %676 = vmatpush.msra.mxu0 0.0
    %677 = vmatpush.msra.mxu0 0.0
    %678 = vmatpush.msra.mxu0 0.0
    %679 = vmatpush.msra.mxu0 0.0
    %680 = vmatpush.msra.mxu0 0.0
    %681 = vmatpush.msra.mxu0 0.0
    %682 = vmatpush.msra.mxu0 0.0
    %683 = vmatpush.msra.mxu0 0.0
    %684 = vmatpush.msra.mxu0 %v664
    %685 = vmatmul.f32.gmra.mxu0 %v667
    %v686 = vpop.f32.mrf.mxu0
    %v687 = vadd.f32 0.0, %v686
    %688 = vdwg.mxu0
    %689 = vrot.lane.b32.xlu0 %v157, 64
    %v690 = vpop.permute.xlu0 %689
    %v693 = vsel %vm178, %v581, 0
    %695 = vmatpush.msra.mxu0 0.0
    %696 = vmatpush.msra.mxu0 0.0
    %697 = vmatpush.msra.mxu0 0.0
    %698 = vmatpush.msra.mxu0 0.0
    %699 = vmatpush.msra.mxu0 0.0
    %700 = vmatpush.msra.mxu0 0.0
    %701 = vmatpush.msra.mxu0 0.0
    %702 = vmatpush.msra.mxu0 0.0
    %703 = vmatpush.msra.mxu0 0.0
    %704 = vmatpush.msra.mxu0 0.0
    %705 = vmatpush.msra.mxu0 0.0
    %706 = vmatpush.msra.mxu0 0.0
    %707 = vmatpush.msra.mxu0 0.0
    %708 = vmatpush.msra.mxu0 0.0
    %709 = vmatpush.msra.mxu0 0.0
    %710 = vmatpush.msra.mxu0 %v690
    %711 = vmatmul.f32.gmra.mxu0 %v693
    %v712 = vpop.f32.mrf.mxu0
    %v713 = vadd.f32 0.0, %v712
    %714 = vdwg.mxu0
    %715 = vrot.lane.b32.xlu0 %v159, 64
    %v716 = vpop.permute.xlu0 %715
    %v719 = vsel %vm178, %v582, 0
    %721 = vmatpush.msra.mxu0 0.0
    %722 = vmatpush.msra.mxu0 0.0
    %723 = vmatpush.msra.mxu0 0.0
    %724 = vmatpush.msra.mxu0 0.0
    %725 = vmatpush.msra.mxu0 0.0
    %726 = vmatpush.msra.mxu0 0.0
    %727 = vmatpush.msra.mxu0 0.0
    %728 = vmatpush.msra.mxu0 0.0
    %729 = vmatpush.msra.mxu0 0.0
    %730 = vmatpush.msra.mxu0 0.0
    %731 = vmatpush.msra.mxu0 0.0
    %732 = vmatpush.msra.mxu0 0.0
    %733 = vmatpush.msra.mxu0 0.0
    %734 = vmatpush.msra.mxu0 0.0
    %735 = vmatpush.msra.mxu0 0.0
    %736 = vmatpush.msra.mxu0 %v716
    %737 = vmatmul.f32.gmra.mxu0 %v719
    %v738 = vpop.f32.mrf.mxu0
    %v739 = vadd.f32 0.0, %v738
    %740 = vdwg.mxu0
    %741 = vrot.lane.b32.xlu0 %v163, 64
    %v742 = vpop.permute.xlu0 %741
    %v745 = vsel %vm178, %v583, 0
    %747 = vmatpush.msra.mxu0 0.0
    %748 = vmatpush.msra.mxu0 0.0
    %749 = vmatpush.msra.mxu0 0.0
    %750 = vmatpush.msra.mxu0 0.0
    %751 = vmatpush.msra.mxu0 0.0
    %752 = vmatpush.msra.mxu0 0.0
    %753 = vmatpush.msra.mxu0 0.0
    %754 = vmatpush.msra.mxu0 0.0
    %755 = vmatpush.msra.mxu0 0.0
    %756 = vmatpush.msra.mxu0 0.0
    %757 = vmatpush.msra.mxu0 0.0
    %758 = vmatpush.msra.mxu0 0.0
    %759 = vmatpush.msra.mxu0 0.0
    %760 = vmatpush.msra.mxu0 0.0
    %761 = vmatpush.msra.mxu0 0.0
    %762 = vmatpush.msra.mxu0 %v742
    %763 = vmatmul.f32.gmra.mxu0 %v745
    %v764 = vpop.f32.mrf.mxu0
    %v765 = vadd.f32 0.0, %v764
    %766 = vdwg.mxu0
    %767 = vrot.lane.b32.xlu0 %v165, 64
    %v768 = vpop.permute.xlu0 %767
    %v771 = vsel %vm178, %v584, 0
    %773 = vmatpush.msra.mxu0 0.0
    %774 = vmatpush.msra.mxu0 0.0
    %775 = vmatpush.msra.mxu0 0.0
    %776 = vmatpush.msra.mxu0 0.0
    %777 = vmatpush.msra.mxu0 0.0
    %778 = vmatpush.msra.mxu0 0.0
    %779 = vmatpush.msra.mxu0 0.0
    %780 = vmatpush.msra.mxu0 0.0
    %781 = vmatpush.msra.mxu0 0.0
    %782 = vmatpush.msra.mxu0 0.0
    %783 = vmatpush.msra.mxu0 0.0
    %784 = vmatpush.msra.mxu0 0.0
    %785 = vmatpush.msra.mxu0 0.0
    %786 = vmatpush.msra.mxu0 0.0
    %787 = vmatpush.msra.mxu0 0.0
    %788 = vmatpush.msra.mxu0 %v768
    %789 = vmatmul.f32.gmra.mxu0 %v771
    %v790 = vpop.f32.mrf.mxu0
    %v791 = vadd.f32 0.0, %v790
    %792 = vdwg.mxu0
    %795 = vrot.lane.b32.xlu0 %v661, 8
    %v796 = vpop.permute.xlu0 %795
    %797 = vrot.lane.b32.xlu0 %v687, 8
    %v798 = vpop.permute.xlu0 %797
    %803 = vrot.lane.b32.xlu0 %v713, 16
    %v804 = vpop.permute.xlu0 %803
    %805 = vrot.lane.b32.xlu0 %v739, 16
    %v806 = vpop.permute.xlu0 %805
    %811 = vrot.lane.b32.xlu0 %v765, 24
    %v812 = vpop.permute.xlu0 %811
    %813 = vrot.lane.b32.xlu0 %v791, 24
    %v814 = vpop.permute.xlu0 %813
    %v817 = vsel %vm178, %v609, %v796
    %v818 = vsel %vm178, %v635, %v798
    %vm819 = vcmask 130048
    %v820 = vsel %vm819, %v817, %v804
    %v821 = vsel %vm819, %v818, %v806
    %vm822 = vcmask 195584
    %v823 = vsel %vm822, %v820, %v812
    %v824 = vsel %vm822, %v821, %v814
    %v825 = vld [vmem:[%s5] sm:$0xff]
    %v826 = vld [vmem:[%s5 + $0x8] sm:$0xff]
    %v827 = vld [vmem:[%s5 + $0x10] sm:$0xff]
    %v828 = vld [vmem:[%s5 + $0x18] sm:$0xff]
    %v829 = vld [vmem:[%s6] sm:$0x1]
    %v831 = vperm.slane %v829, 0
    %v834 = vsel %vm51, %v823, 0
    %v837 = vsel %vm51, %v824, 0
    %839 = vmatpush.msra.mxu0 0.0
    %840 = vmatpush.msra.mxu0 0.0
    %841 = vmatpush.msra.mxu0 0.0
    %842 = vmatpush.msra.mxu0 0.0
    %843 = vmatpush.msra.mxu0 0.0
    %844 = vmatpush.msra.mxu0 0.0
    %845 = vmatpush.msra.mxu0 0.0
    %846 = vmatpush.msra.mxu0 0.0
    %847 = vmatpush.msra.mxu0 0.0
    %848 = vmatpush.msra.mxu0 0.0
    %849 = vmatpush.msra.mxu0 0.0
    %850 = vmatpush.msra.mxu0 0.0
    %851 = vmatpush.msra.mxu0 %v828
    %852 = vmatpush.msra.mxu0 %v827
    %853 = vmatpush.msra.mxu0 %v826
    %854 = vmatpush.msra.mxu0 %v825
    %855 = vmatmul.f32.gmra.mxu0 %v834
    %v856 = vpop.f32.mrf.mxu0
    %v857 = vadd.f32 %v831, %v856
    %858 = vmatmul.f32.gmra.mxu0 %v837
    %v859 = vpop.f32.mrf.mxu0
    %v860 = vadd.f32 %v831, %v859
    %861 = vdwg.mxu0
    %v862 = vperm.slane %v47, 2
    %v863 = vperm.slane %v49, 2
    %v864 = vmul.f32 %v862, %v857
    %v865 = vmul.f32 %v863, %v860
    %v866 = vadd.f32 %v45, %v864
    %v867 = vadd.f32 %v46, %v865
    %v868 = vsel %vm51, %v866, 0.0
    %869 = vadd.xlane.f32.xlu0 %v868
    %v870 = vpop.xlane.xlu0 %869
    %v871 = vsel %vm51, %v867, 0.0
    %872 = vadd.xlane.f32.xlu0 %v871
    %v873 = vpop.xlane.xlu0 %872
    %v874 = vmul.f32 %v870, %v64
    %v875 = vmul.f32 %v873, %v64
    %v876 = vsub.f32 %v866, %v874
    %v877 = vsub.f32 %v867, %v875
    %v878 = vmul.f32 %v876, %v876
    %v879 = vmul.f32 %v877, %v877
    %v880 = vsel %vm51, %v878, 0.0
    %881 = vadd.xlane.f32.xlu0 %v880
    %v882 = vpop.xlane.xlu0 %881
    %v883 = vsel %vm51, %v879, 0.0
    %884 = vadd.xlane.f32.xlu0 %v883
    %v885 = vpop.xlane.xlu0 %884
    %v886 = vmul.f32 %v882, %v64
    %v887 = vmul.f32 %v885, %v64
    %v888 = vadd.f32 %v886, 1e-06
    %v889 = vadd.f32 %v887, 1e-06
    %v890 = vrsqrt.pop %v888
    %v891 = vmul.f32 %v890, %v888
    %v892 = vmul.f32 %v891, %v890
    %v893 = vmul.f32 0.5, %v892
    %v894 = vsub.f32 1.5, %v893
    %v895 = vmul.f32 %v890, %v894
    %vm896 = vweird.f32 %v888
    %vm897 = vweird.f32 %v890
    %vm898 = vmor %vm896, %vm897
    %v899 = vsel %vm898, %v890, %v895
    %v900 = vrsqrt.pop %v889
    %v901 = vmul.f32 %v900, %v889
    %v902 = vmul.f32 %v901, %v900
    %v903 = vmul.f32 0.5, %v902
    %v904 = vsub.f32 1.5, %v903
    %v905 = vmul.f32 %v900, %v904
    %vm906 = vweird.f32 %v889
    %vm907 = vweird.f32 %v900
    %vm908 = vmor %vm906, %vm907
    %v909 = vsel %vm908, %v900, %v905
    %v910 = vmul.f32 %v876, %v899
    %v911 = vmul.f32 %v877, %v909
    %v912 = vperm.slane %v47, 4
    %v913 = vperm.slane %v49, 4
    %v914 = vmul.f32 %v910, %v912
    %v915 = vmul.f32 %v911, %v913
    %v916 = vperm.slane %v47, 3
    %v917 = vperm.slane %v49, 3
    %v918 = vadd.f32 %v914, %v916
    %v919 = vadd.f32 %v915, %v917
    %v920 = vld [vmem:[%s7] sm:$0xff]
    %v921 = vld [vmem:[%s7 + $0x8] sm:$0xff]
    %v922 = vld [vmem:[%s7 + $0x10] sm:$0xff]
    %v923 = vld [vmem:[%s7 + $0x18] sm:$0xff]
    %v924 = vld [vmem:[%s8] sm:$0x1]
    %v926 = vperm.slane %v924, 0
    %v929 = vsel %vm51, %v918, 0
    %v932 = vsel %vm51, %v919, 0
    %934 = vmatpush.msra.mxu0 0.0
    %935 = vmatpush.msra.mxu0 0.0
    %936 = vmatpush.msra.mxu0 0.0
    %937 = vmatpush.msra.mxu0 0.0
    %938 = vmatpush.msra.mxu0 0.0
    %939 = vmatpush.msra.mxu0 0.0
    %940 = vmatpush.msra.mxu0 0.0
    %941 = vmatpush.msra.mxu0 0.0
    %942 = vmatpush.msra.mxu0 0.0
    %943 = vmatpush.msra.mxu0 0.0
    %944 = vmatpush.msra.mxu0 0.0
    %945 = vmatpush.msra.mxu0 0.0
    %946 = vmatpush.msra.mxu0 %v923
    %947 = vmatpush.msra.mxu0 %v922
    %948 = vmatpush.msra.mxu0 %v921
    %949 = vmatpush.msra.mxu0 %v920
    %950 = vmatmul.f32.gmra.mxu0 %v929
    %v951 = vpop.f32.mrf.mxu0
    %v952 = vadd.f32 %v926, %v951
    %953 = vmatmul.f32.gmra.mxu0 %v932
    %v954 = vpop.f32.mrf.mxu0
    %v955 = vadd.f32 %v926, %v954
    %956 = vdwg.mxu0
    %v957 = vmul.f32 %v952, 0.5
    %v958 = vmul.f32 %v955, 0.5
    %v959 = vmul.f32 %v952, 0.044715
    %v960 = vmul.f32 %v955, 0.044715
    %v961 = vmul.f32 %v959, %v952
    %v962 = vmul.f32 %v960, %v955
    %v963 = vmul.f32 %v961, %v952
    %v964 = vmul.f32 %v962, %v955
    %v965 = vadd.f32 %v952, %v963
    %v966 = vadd.f32 %v955, %v964
    %v967 = vmul.f32 %v965, 0.7978846
    %v968 = vmul.f32 %v966, 0.7978846
    %v969 = vtanh.pop %v967
    %v970 = vtanh.pop %v968
    %v971 = vadd.f32 %v969, 1.0
    %v972 = vadd.f32 %v970, 1.0
    %v973 = vmul.f32 %v957, %v971
    %v974 = vmul.f32 %v958, %v972
    %v975 = vld [vmem:[%s9] sm:$0xff]
    %v976 = vld [vmem:[%s9 + $0x8] sm:$0xff]
    %v977 = vld [vmem:[%s9 + $0x10] sm:$0xff]
    %v978 = vld [vmem:[%s9 + $0x18] sm:$0xff]
    %v979 = vld [vmem:[%s9 + $0x20] sm:$0xff]
    %v980 = vld [vmem:[%s9 + $0x28] sm:$0xff]
    %v981 = vld [vmem:[%s9 + $0x30] sm:$0xff]
    %v982 = vld [vmem:[%s9 + $0x38] sm:$0xff]
    %v983 = vld [vmem:[%s9 + $0x40] sm:$0xff]
    %v984 = vld [vmem:[%s9 + $0x48] sm:$0xff]
    %v985 = vld [vmem:[%s9 + $0x50] sm:$0xff]
    %v986 = vld [vmem:[%s9 + $0x58] sm:$0xff]
    %v987 = vld [vmem:[%s9 + $0x60] sm:$0xff]
    %v988 = vld [vmem:[%s9 + $0x68] sm:$0xff]
    %v989 = vld [vmem:[%s9 + $0x70] sm:$0xff]
    %v990 = vld [vmem:[%s9 + $0x78] sm:$0xff]
    %v991 = vld [vmem:[%s10] sm:$0x1]
    %v993 = vperm.slane %v991, 0
    %995 = vmatpush.msra.mxu0 %v990
    %996 = vmatpush.msra.mxu0 %v989
    %997 = vmatpush.msra.mxu0 %v988
    %998 = vmatpush.msra.mxu0 %v987
    %999 = vmatpush.msra.mxu0 %v986
    %1000 = vmatpush.msra.mxu0 %v985
    %1001 = vmatpush.msra.mxu0 %v984
    %1002 = vmatpush.msra.mxu0 %v983
    %1003 = vmatpush.msra.mxu0 %v982
    %1004 = vmatpush.msra.mxu0 %v981
    %1005 = vmatpush.msra.mxu0 %v980
    %1006 = vmatpush.msra.mxu0 %v979
    %1007 = vmatpush.msra.mxu0 %v978
    %1008 = vmatpush.msra.mxu0 %v977
    %1009 = vmatpush.msra.mxu0 %v976
    %1010 = vmatpush.msra.mxu0 %v975
    %1011 = vmatmul.f32.gmra.mxu0 %v973
    %v1012 = vpop.f32.mrf.mxu0
    %v1013 = vadd.f32 %v993, %v1012
    %1014 = vmatmul.f32.gmra.mxu0 %v974
    %v1015 = vpop.f32.mrf.mxu0
    %v1016 = vadd.f32 %v993, %v1015
    %1017 = vdwg.mxu0
    %v1018 = vperm.slane %v47, 5
    %v1019 = vperm.slane %v49, 5
    %v1020 = vmul.f32 %v1018, %v1013
    %v1021 = vmul.f32 %v1019, %v1016
    %v1022 = vadd.f32 %v866, %v1020
    %v1023 = vadd.f32 %v867, %v1021
    %v1024 = vsel %vm51, %v1022, 0.0
    %1025 = vadd.xlane.f32.xlu0 %v1024
    %v1026 = vpop.xlane.xlu0 %1025
    %v1027 = vsel %vm51, %v1023, 0.0
    %1028 = vadd.xlane.f32.xlu0 %v1027
    %v1029 = vpop.xlane.xlu0 %1028
    %v1030 = vmul.f32 %v1026, %v64
    %v1031 = vmul.f32 %v1029, %v64
    %v1032 = vsub.f32 %v1022, %v1030
    %v1033 = vsub.f32 %v1023, %v1031
    %v1034 = vmul.f32 %v1032, %v1032
    %v1035 = vmul.f32 %v1033, %v1033
    %v1036 = vsel %vm51, %v1034, 0.0
    %1037 = vadd.xlane.f32.xlu0 %v1036
    %v1038 = vpop.xlane.xlu0 %1037
    %v1039 = vsel %vm51, %v1035, 0.0
    %1040 = vadd.xlane.f32.xlu0 %v1039
    %v1041 = vpop.xlane.xlu0 %1040
    %v1042 = vmul.f32 %v1038, %v64
    %v1043 = vmul.f32 %v1041, %v64
    %v1044 = vadd.f32 %v1042, 1e-06
    %v1045 = vadd.f32 %v1043, 1e-06
    %v1046 = vrsqrt.pop %v1044
    %v1047 = vmul.f32 %v1046, %v1044
    %v1048 = vmul.f32 %v1047, %v1046
    %v1049 = vmul.f32 0.5, %v1048
    %v1050 = vsub.f32 1.5, %v1049
    %v1051 = vmul.f32 %v1046, %v1050
    %vm1052 = vweird.f32 %v1044
    %vm1053 = vweird.f32 %v1046
    %vm1054 = vmor %vm1052, %vm1053
    %v1055 = vsel %vm1054, %v1046, %v1051
    %v1056 = vrsqrt.pop %v1045
    %v1057 = vmul.f32 %v1056, %v1045
    %v1058 = vmul.f32 %v1057, %v1056
    %v1059 = vmul.f32 0.5, %v1058
    %v1060 = vsub.f32 1.5, %v1059
    %v1061 = vmul.f32 %v1056, %v1060
    %vm1062 = vweird.f32 %v1045
    %vm1063 = vweird.f32 %v1056
    %vm1064 = vmor %vm1062, %vm1063
    %v1065 = vsel %vm1064, %v1056, %v1061
    %v1066 = vmul.f32 %v1032, %v1055
    %v1067 = vmul.f32 %v1033, %v1065
    %v1068 = vperm.slane %v48, 1
    %v1069 = vperm.slane %v50, 1
    %v1070 = vmul.f32 %v1066, %v1068
    %v1071 = vmul.f32 %v1067, %v1069
    %v1072 = vperm.slane %v48, 0
    %v1073 = vperm.slane %v50, 0
    %v1074 = vadd.f32 %v1070, %v1072
    %v1075 = vadd.f32 %v1071, %v1073
    %s1076 = scalar_lea.vmem %s3, 32
    %v1077 = vld [vmem:[%s1076] sm:$0xff]
    %v1078 = vld [vmem:[%s1076 + $0x8] sm:$0xff]
    %v1079 = vld [vmem:[%s1076 + $0x10] sm:$0xff]
    %v1080 = vld [vmem:[%s1076 + $0x18] sm:$0xff]
    %s1081 = scalar_lea.vmem %s4, 1
    %v1082 = vld [vmem:[%s1081] sm:$0x1]
    %v1084 = vperm.slane %v1082, 0
    %v1087 = vsel %vm51, %v1074, 0
    %v1090 = vsel %vm51, %v1075, 0
    %1092 = vmatpush.msra.mxu0 0.0
    %1093 = vmatpush.msra.mxu0 0.0
    %1094 = vmatpush.msra.mxu0 0.0
    %1095 = vmatpush.msra.mxu0 0.0
    %1096 = vmatpush.msra.mxu0 0.0
    %1097 = vmatpush.msra.mxu0 0.0
    %1098 = vmatpush.msra.mxu0 0.0
    %1099 = vmatpush.msra.mxu0 0.0
    %1100 = vmatpush.msra.mxu0 0.0
    %1101 = vmatpush.msra.mxu0 0.0
    %1102 = vmatpush.msra.mxu0 0.0
    %1103 = vmatpush.msra.mxu0 0.0
    %1104 = vmatpush.msra.mxu0 %v1080
    %1105 = vmatpush.msra.mxu0 %v1079
    %1106 = vmatpush.msra.mxu0 %v1078
    %1107 = vmatpush.msra.mxu0 %v1077
    %1108 = vmatmul.f32.gmra.mxu0 %v1087
    %v1109 = vpop.f32.mrf.mxu0
    %v1110 = vadd.f32 %v1084, %v1109
    %1111 = vmatmul.f32.gmra.mxu0 %v1090
    %v1112 = vpop.f32.mrf.mxu0
    %v1113 = vadd.f32 %v1084, %v1112
    %1114 = vdwg.mxu0
    %1117 = vrot.lane.b32.xlu0 %v1110, 120
    %v1118 = vpop.permute.xlu0 %1117
    %1119 = vrot.lane.b32.xlu0 %v1113, 120
    %v1120 = vpop.permute.xlu0 %1119
    %1123 = vrot.lane.b32.xlu0 %v1110, 112
    %v1124 = vpop.permute.xlu0 %1123
    %1125 = vrot.lane.b32.xlu0 %v1113, 112
    %v1126 = vpop.permute.xlu0 %1125
    %1129 = vrot.lane.b32.xlu0 %v1110, 104
    %v1130 = vpop.permute.xlu0 %1129
    %1131 = vrot.lane.b32.xlu0 %v1113, 104
    %v1132 = vpop.permute.xlu0 %1131
    %v1135 = vmul.f32 %v1110, 0.35355338
    %v1136 = vmul.f32 %v1113, 0.35355338
    %v1137 = vmul.f32 %v1118, 0.35355338
    %v1138 = vmul.f32 %v1120, 0.35355338
    %v1139 = vmul.f32 %v1124, 0.35355338
    %v1140 = vmul.f32 %v1126, 0.35355338
    %v1141 = vmul.f32 %v1130, 0.35355338
    %v1142 = vmul.f32 %v1132, 0.35355338
    %1143 = vrot.lane.b32.xlu0 %v1110, 96
    %v1144 = vpop.permute.xlu0 %1143
    %v1146 = vsel %vm178, %v1135, 0
    %v1148 = vsel %vm178, %v1144, 0
    %1150 = vmatpush.xpose.msra.mxu0 0.0
    %1151 = vmatpush.xpose.msra.mxu0 0.0
    %1152 = vmatpush.xpose.msra.mxu0 0.0
    %1153 = vmatpush.xpose.msra.mxu0 0.0
    %1154 = vmatpush.xpose.msra.mxu0 0.0
    %1155 = vmatpush.xpose.msra.mxu0 0.0
    %1156 = vmatpush.xpose.msra.mxu0 0.0
    %1157 = vmatpush.xpose.msra.mxu0 0.0
    %1158 = vmatpush.xpose.msra.mxu0 0.0
    %1159 = vmatpush.xpose.msra.mxu0 0.0
    %1160 = vmatpush.xpose.msra.mxu0 0.0
    %1161 = vmatpush.xpose.msra.mxu0 0.0
    %1162 = vmatpush.xpose.msra.mxu0 0.0
    %1163 = vmatpush.xpose.msra.mxu0 0.0
    %1164 = vmatpush.xpose.msra.mxu0 0.0
    %1165 = vmatpush.xpose.msra.mxu0 %v1148
    %1166 = vmatmul.f32.gmra.mxu0 %v1146
    %v1167 = vpop.f32.mrf.mxu0
    %v1168 = vadd.f32 0.0, %v1167
    %1169 = vdwg.mxu0
    %1170 = vrot.lane.b32.xlu0 %v1113, 96
    %v1171 = vpop.permute.xlu0 %1170
    %v1173 = vsel %vm178, %v1136, 0
    %v1175 = vsel %vm178, %v1171, 0
    %1177 = vmatpush.xpose.msra.mxu0 0.0
    %1178 = vmatpush.xpose.msra.mxu0 0.0
    %1179 = vmatpush.xpose.msra.mxu0 0.0
    %1180 = vmatpush.xpose.msra.mxu0 0.0
    %1181 = vmatpush.xpose.msra.mxu0 0.0
    %1182 = vmatpush.xpose.msra.mxu0 0.0
    %1183 = vmatpush.xpose.msra.mxu0 0.0
    %1184 = vmatpush.xpose.msra.mxu0 0.0
    %1185 = vmatpush.xpose.msra.mxu0 0.0
    %1186 = vmatpush.xpose.msra.mxu0 0.0
    %1187 = vmatpush.xpose.msra.mxu0 0.0
    %1188 = vmatpush.xpose.msra.mxu0 0.0
    %1189 = vmatpush.xpose.msra.mxu0 0.0
    %1190 = vmatpush.xpose.msra.mxu0 0.0
    %1191 = vmatpush.xpose.msra.mxu0 0.0
    %1192 = vmatpush.xpose.msra.mxu0 %v1175
    %1193 = vmatmul.f32.gmra.mxu0 %v1173
    %v1194 = vpop.f32.mrf.mxu0
    %v1195 = vadd.f32 0.0, %v1194
    %1196 = vdwg.mxu0
    %1197 = vrot.lane.b32.xlu0 %v1118, 96
    %v1198 = vpop.permute.xlu0 %1197
    %v1200 = vsel %vm178, %v1137, 0
    %v1202 = vsel %vm178, %v1198, 0
    %1204 = vmatpush.xpose.msra.mxu0 0.0
    %1205 = vmatpush.xpose.msra.mxu0 0.0
    %1206 = vmatpush.xpose.msra.mxu0 0.0
    %1207 = vmatpush.xpose.msra.mxu0 0.0
    %1208 = vmatpush.xpose.msra.mxu0 0.0
    %1209 = vmatpush.xpose.msra.mxu0 0.0
    %1210 = vmatpush.xpose.msra.mxu0 0.0
    %1211 = vmatpush.xpose.msra.mxu0 0.0
    %1212 = vmatpush.xpose.msra.mxu0 0.0
    %1213 = vmatpush.xpose.msra.mxu0 0.0
    %1214 = vmatpush.xpose.msra.mxu0 0.0
    %1215 = vmatpush.xpose.msra.mxu0 0.0
    %1216 = vmatpush.xpose.msra.mxu0 0.0
    %1217 = vmatpush.xpose.msra.mxu0 0.0
    %1218 = vmatpush.xpose.msra.mxu0 0.0
    %1219 = vmatpush.xpose.msra.mxu0 %v1202
    %1220 = vmatmul.f32.gmra.mxu0 %v1200
    %v1221 = vpop.f32.mrf.mxu0
    %v1222 = vadd.f32 0.0, %v1221
    %1223 = vdwg.mxu0
    %1224 = vrot.lane.b32.xlu0 %v1120, 96
    %v1225 = vpop.permute.xlu0 %1224
    %v1227 = vsel %vm178, %v1138, 0
    %v1229 = vsel %vm178, %v1225, 0
    %1231 = vmatpush.xpose.msra.mxu0 0.0
    %1232 = vmatpush.xpose.msra.mxu0 0.0
    %1233 = vmatpush.xpose.msra.mxu0 0.0
    %1234 = vmatpush.xpose.msra.mxu0 0.0
    %1235 = vmatpush.xpose.msra.mxu0 0.0
    %1236 = vmatpush.xpose.msra.mxu0 0.0
    %1237 = vmatpush.xpose.msra.mxu0 0.0
    %1238 = vmatpush.xpose.msra.mxu0 0.0
    %1239 = vmatpush.xpose.msra.mxu0 0.0
    %1240 = vmatpush.xpose.msra.mxu0 0.0
    %1241 = vmatpush.xpose.msra.mxu0 0.0
    %1242 = vmatpush.xpose.msra.mxu0 0.0
    %1243 = vmatpush.xpose.msra.mxu0 0.0
    %1244 = vmatpush.xpose.msra.mxu0 0.0
    %1245 = vmatpush.xpose.msra.mxu0 0.0
    %1246 = vmatpush.xpose.msra.mxu0 %v1229
    %1247 = vmatmul.f32.gmra.mxu0 %v1227
    %v1248 = vpop.f32.mrf.mxu0
    %v1249 = vadd.f32 0.0, %v1248
    %1250 = vdwg.mxu0
    %1251 = vrot.lane.b32.xlu0 %v1124, 96
    %v1252 = vpop.permute.xlu0 %1251
    %v1254 = vsel %vm178, %v1139, 0
    %v1256 = vsel %vm178, %v1252, 0
    %1258 = vmatpush.xpose.msra.mxu0 0.0
    %1259 = vmatpush.xpose.msra.mxu0 0.0
    %1260 = vmatpush.xpose.msra.mxu0 0.0
    %1261 = vmatpush.xpose.msra.mxu0 0.0
    %1262 = vmatpush.xpose.msra.mxu0 0.0
    %1263 = vmatpush.xpose.msra.mxu0 0.0
    %1264 = vmatpush.xpose.msra.mxu0 0.0
    %1265 = vmatpush.xpose.msra.mxu0 0.0
    %1266 = vmatpush.xpose.msra.mxu0 0.0
    %1267 = vmatpush.xpose.msra.mxu0 0.0
    %1268 = vmatpush.xpose.msra.mxu0 0.0
    %1269 = vmatpush.xpose.msra.mxu0 0.0
    %1270 = vmatpush.xpose.msra.mxu0 0.0
    %1271 = vmatpush.xpose.msra.mxu0 0.0
    %1272 = vmatpush.xpose.msra.mxu0 0.0
    %1273 = vmatpush.xpose.msra.mxu0 %v1256
    %1274 = vmatmul.f32.gmra.mxu0 %v1254
    %v1275 = vpop.f32.mrf.mxu0
    %v1276 = vadd.f32 0.0, %v1275
    %1277 = vdwg.mxu0
    %1278 = vrot.lane.b32.xlu0 %v1126, 96
    %v1279 = vpop.permute.xlu0 %1278
    %v1281 = vsel %vm178, %v1140, 0
    %v1283 = vsel %vm178, %v1279, 0
    %1285 = vmatpush.xpose.msra.mxu0 0.0
    %1286 = vmatpush.xpose.msra.mxu0 0.0
    %1287 = vmatpush.xpose.msra.mxu0 0.0
    %1288 = vmatpush.xpose.msra.mxu0 0.0
    %1289 = vmatpush.xpose.msra.mxu0 0.0
    %1290 = vmatpush.xpose.msra.mxu0 0.0
    %1291 = vmatpush.xpose.msra.mxu0 0.0
    %1292 = vmatpush.xpose.msra.mxu0 0.0
    %1293 = vmatpush.xpose.msra.mxu0 0.0
    %1294 = vmatpush.xpose.msra.mxu0 0.0
    %1295 = vmatpush.xpose.msra.mxu0 0.0
    %1296 = vmatpush.xpose.msra.mxu0 0.0
    %1297 = vmatpush.xpose.msra.mxu0 0.0
    %1298 = vmatpush.xpose.msra.mxu0 0.0
    %1299 = vmatpush.xpose.msra.mxu0 0.0
    %1300 = vmatpush.xpose.msra.mxu0 %v1283
    %1301 = vmatmul.f32.gmra.mxu0 %v1281
    %v1302 = vpop.f32.mrf.mxu0
    %v1303 = vadd.f32 0.0, %v1302
    %1304 = vdwg.mxu0
    %1305 = vrot.lane.b32.xlu0 %v1130, 96
    %v1306 = vpop.permute.xlu0 %1305
    %v1308 = vsel %vm178, %v1141, 0
    %v1310 = vsel %vm178, %v1306, 0
    %1312 = vmatpush.xpose.msra.mxu0 0.0
    %1313 = vmatpush.xpose.msra.mxu0 0.0
    %1314 = vmatpush.xpose.msra.mxu0 0.0
    %1315 = vmatpush.xpose.msra.mxu0 0.0
    %1316 = vmatpush.xpose.msra.mxu0 0.0
    %1317 = vmatpush.xpose.msra.mxu0 0.0
    %1318 = vmatpush.xpose.msra.mxu0 0.0
    %1319 = vmatpush.xpose.msra.mxu0 0.0
    %1320 = vmatpush.xpose.msra.mxu0 0.0
    %1321 = vmatpush.xpose.msra.mxu0 0.0
    %1322 = vmatpush.xpose.msra.mxu0 0.0
    %1323 = vmatpush.xpose.msra.mxu0 0.0
    %1324 = vmatpush.xpose.msra.mxu0 0.0
    %1325 = vmatpush.xpose.msra.mxu0 0.0
    %1326 = vmatpush.xpose.msra.mxu0 0.0
    %1327 = vmatpush.xpose.msra.mxu0 %v1310
    %1328 = vmatmul.f32.gmra.mxu0 %v1308
    %v1329 = vpop.f32.mrf.mxu0
    %v1330 = vadd.f32 0.0, %v1329
    %1331 = vdwg.mxu0
    %1332 = vrot.lane.b32.xlu0 %v1132, 96
    %v1333 = vpop.permute.xlu0 %1332
    %v1335 = vsel %vm178, %v1142, 0
    %v1337 = vsel %vm178, %v1333, 0
    %1339 = vmatpush.xpose.msra.mxu0 0.0
    %1340 = vmatpush.xpose.msra.mxu0 0.0
    %1341 = vmatpush.xpose.msra.mxu0 0.0
    %1342 = vmatpush.xpose.msra.mxu0 0.0
    %1343 = vmatpush.xpose.msra.mxu0 0.0
    %1344 = vmatpush.xpose.msra.mxu0 0.0
    %1345 = vmatpush.xpose.msra.mxu0 0.0
    %1346 = vmatpush.xpose.msra.mxu0 0.0
    %1347 = vmatpush.xpose.msra.mxu0 0.0
    %1348 = vmatpush.xpose.msra.mxu0 0.0
    %1349 = vmatpush.xpose.msra.mxu0 0.0
    %1350 = vmatpush.xpose.msra.mxu0 0.0
    %1351 = vmatpush.xpose.msra.mxu0 0.0
    %1352 = vmatpush.xpose.msra.mxu0 0.0
    %1353 = vmatpush.xpose.msra.mxu0 0.0
    %1354 = vmatpush.xpose.msra.mxu0 %v1337
    %1355 = vmatmul.f32.gmra.mxu0 %v1335
    %v1356 = vpop.f32.mrf.mxu0
    %v1357 = vadd.f32 0.0, %v1356
    %1358 = vdwg.mxu0
    %v1359 = vsel %vm178, %v1168, -inf
    %1360 = vmax.xlane.f32.xlu0 %v1359
    %v1361 = vpop.xlane.xlu0 %1360
    %v1362 = vsel %vm178, %v1195, -inf
    %1363 = vmax.xlane.f32.xlu0 %v1362
    %v1364 = vpop.xlane.xlu0 %1363
    %v1365 = vsel %vm178, %v1222, -inf
    %1366 = vmax.xlane.f32.xlu0 %v1365
    %v1367 = vpop.xlane.xlu0 %1366
    %v1368 = vsel %vm178, %v1249, -inf
    %1369 = vmax.xlane.f32.xlu0 %v1368
    %v1370 = vpop.xlane.xlu0 %1369
    %v1371 = vsel %vm178, %v1276, -inf
    %1372 = vmax.xlane.f32.xlu0 %v1371
    %v1373 = vpop.xlane.xlu0 %1372
    %v1374 = vsel %vm178, %v1303, -inf
    %1375 = vmax.xlane.f32.xlu0 %v1374
    %v1376 = vpop.xlane.xlu0 %1375
    %v1377 = vsel %vm178, %v1330, -inf
    %1378 = vmax.xlane.f32.xlu0 %v1377
    %v1379 = vpop.xlane.xlu0 %1378
    %v1380 = vsel %vm178, %v1357, -inf
    %1381 = vmax.xlane.f32.xlu0 %v1380
    %v1382 = vpop.xlane.xlu0 %1381
    %v1383 = vsub.f32 %v1168, %v1361
    %v1384 = vsub.f32 %v1195, %v1364
    %v1385 = vsub.f32 %v1222, %v1367
    %v1386 = vsub.f32 %v1249, %v1370
    %v1387 = vsub.f32 %v1276, %v1373
    %v1388 = vsub.f32 %v1303, %v1376
    %v1389 = vsub.f32 %v1330, %v1379
    %v1390 = vsub.f32 %v1357, %v1382
    %v1391 = vmul.f32 %v1383, 1.442695
    %v1392 = vpow.pop %v1391
    %v1393 = vmul.f32 %v1384, 1.442695
    %v1394 = vpow.pop %v1393
    %v1395 = vmul.f32 %v1385, 1.442695
    %v1396 = vpow.pop %v1395
    %v1397 = vmul.f32 %v1386, 1.442695
    %v1398 = vpow.pop %v1397
    %v1399 = vmul.f32 %v1387, 1.442695
    %v1400 = vpow.pop %v1399
    %v1401 = vmul.f32 %v1388, 1.442695
    %v1402 = vpow.pop %v1401
    %v1403 = vmul.f32 %v1389, 1.442695
    %v1404 = vpow.pop %v1403
    %v1405 = vmul.f32 %v1390, 1.442695
    %v1406 = vpow.pop %v1405
    %v1407 = vsel %vm178, %v1392, 0.0
    %1408 = vadd.xlane.f32.xlu0 %v1407
    %v1409 = vpop.xlane.xlu0 %1408
    %v1410 = vsel %vm178, %v1394, 0.0
    %1411 = vadd.xlane.f32.xlu0 %v1410
    %v1412 = vpop.xlane.xlu0 %1411
    %v1413 = vsel %vm178, %v1396, 0.0
    %1414 = vadd.xlane.f32.xlu0 %v1413
    %v1415 = vpop.xlane.xlu0 %1414
    %v1416 = vsel %vm178, %v1398, 0.0
    %1417 = vadd.xlane.f32.xlu0 %v1416
    %v1418 = vpop.xlane.xlu0 %1417
    %v1419 = vsel %vm178, %v1400, 0.0
    %1420 = vadd.xlane.f32.xlu0 %v1419
    %v1421 = vpop.xlane.xlu0 %1420
    %v1422 = vsel %vm178, %v1402, 0.0
    %1423 = vadd.xlane.f32.xlu0 %v1422
    %v1424 = vpop.xlane.xlu0 %1423
    %v1425 = vsel %vm178, %v1404, 0.0
    %1426 = vadd.xlane.f32.xlu0 %v1425
    %v1427 = vpop.xlane.xlu0 %1426
    %v1428 = vsel %vm178, %v1406, 0.0
    %1429 = vadd.xlane.f32.xlu0 %v1428
    %v1430 = vpop.xlane.xlu0 %1429
    %v1431 = vrcp.pop %v1409
    %v1432 = vmul.f32 %v1409, %v1431
    %v1433 = vsub.f32 1.0, %v1432
    %v1434 = vmul.f32 %v1431, %v1433
    %v1435 = vadd.f32 %v1431, %v1434
    %vm1436 = vweird.f32 %v1409
    %vm1437 = vweird.f32 %v1431
    %vm1438 = vmor %vm1436, %vm1437
    %v1439 = vsel %vm1438, %v1431, %v1435
    %v1440 = vand.u32 2147483647, %v1409
    %vm1441 = vcmp.eq.f32.partialorder %v1440, 8.507059e+37
    %v1442 = vand.u32 %v1409, 2147483648
    %v1443 = vor.u32 1.1754944e-38, %v1442
    %v1444 = vsel %vm1441, %v1443, %v1439
    %v1445 = vrcp.pop %v1412
    %v1446 = vmul.f32 %v1412, %v1445
    %v1447 = vsub.f32 1.0, %v1446
    %v1448 = vmul.f32 %v1445, %v1447
    %v1449 = vadd.f32 %v1445, %v1448
    %vm1450 = vweird.f32 %v1412
    %vm1451 = vweird.f32 %v1445
    %vm1452 = vmor %vm1450, %vm1451
    %v1453 = vsel %vm1452, %v1445, %v1449
    %v1454 = vand.u32 2147483647, %v1412
    %vm1455 = vcmp.eq.f32.partialorder %v1454, 8.507059e+37
    %v1456 = vand.u32 %v1412, 2147483648
    %v1457 = vor.u32 1.1754944e-38, %v1456
    %v1458 = vsel %vm1455, %v1457, %v1453
    %v1459 = vrcp.pop %v1415
    %v1460 = vmul.f32 %v1415, %v1459
    %v1461 = vsub.f32 1.0, %v1460
    %v1462 = vmul.f32 %v1459, %v1461
    %v1463 = vadd.f32 %v1459, %v1462
    %vm1464 = vweird.f32 %v1415
    %vm1465 = vweird.f32 %v1459
    %vm1466 = vmor %vm1464, %vm1465
    %v1467 = vsel %vm1466, %v1459, %v1463
    %v1468 = vand.u32 2147483647, %v1415
    %vm1469 = vcmp.eq.f32.partialorder %v1468, 8.507059e+37
    %v1470 = vand.u32 %v1415, 2147483648
    %v1471 = vor.u32 1.1754944e-38, %v1470
    %v1472 = vsel %vm1469, %v1471, %v1467
    %v1473 = vrcp.pop %v1418
    %v1474 = vmul.f32 %v1418, %v1473
    %v1475 = vsub.f32 1.0, %v1474
    %v1476 = vmul.f32 %v1473, %v1475
    %v1477 = vadd.f32 %v1473, %v1476
    %vm1478 = vweird.f32 %v1418
    %vm1479 = vweird.f32 %v1473
    %vm1480 = vmor %vm1478, %vm1479
    %v1481 = vsel %vm1480, %v1473, %v1477
    %v1482 = vand.u32 2147483647, %v1418
    %vm1483 = vcmp.eq.f32.partialorder %v1482, 8.507059e+37
    %v1484 = vand.u32 %v1418, 2147483648
    %v1485 = vor.u32 1.1754944e-38, %v1484
    %v1486 = vsel %vm1483, %v1485, %v1481
    %v1487 = vrcp.pop %v1421
    %v1488 = vmul.f32 %v1421, %v1487
    %v1489 = vsub.f32 1.0, %v1488
    %v1490 = vmul.f32 %v1487, %v1489
    %v1491 = vadd.f32 %v1487, %v1490
    %vm1492 = vweird.f32 %v1421
    %vm1493 = vweird.f32 %v1487
    %vm1494 = vmor %vm1492, %vm1493
    %v1495 = vsel %vm1494, %v1487, %v1491
    %v1496 = vand.u32 2147483647, %v1421
    %vm1497 = vcmp.eq.f32.partialorder %v1496, 8.507059e+37
    %v1498 = vand.u32 %v1421, 2147483648
    %v1499 = vor.u32 1.1754944e-38, %v1498
    %v1500 = vsel %vm1497, %v1499, %v1495
    %v1501 = vrcp.pop %v1424
    %v1502 = vmul.f32 %v1424, %v1501
    %v1503 = vsub.f32 1.0, %v1502
    %v1504 = vmul.f32 %v1501, %v1503
    %v1505 = vadd.f32 %v1501, %v1504
    %vm1506 = vweird.f32 %v1424
    %vm1507 = vweird.f32 %v1501
    %vm1508 = vmor %vm1506, %vm1507
    %v1509 = vsel %vm1508, %v1501, %v1505
    %v1510 = vand.u32 2147483647, %v1424
    %vm1511 = vcmp.eq.f32.partialorder %v1510, 8.507059e+37
    %v1512 = vand.u32 %v1424, 2147483648
    %v1513 = vor.u32 1.1754944e-38, %v1512
    %v1514 = vsel %vm1511, %v1513, %v1509
    %v1515 = vrcp.pop %v1427
    %v1516 = vmul.f32 %v1427, %v1515
    %v1517 = vsub.f32 1.0, %v1516
    %v1518 = vmul.f32 %v1515, %v1517
    %v1519 = vadd.f32 %v1515, %v1518
    %vm1520 = vweird.f32 %v1427
    %vm1521 = vweird.f32 %v1515
    %vm1522 = vmor %vm1520, %vm1521
    %v1523 = vsel %vm1522, %v1515, %v1519
    %v1524 = vand.u32 2147483647, %v1427
    %vm1525 = vcmp.eq.f32.partialorder %v1524, 8.507059e+37
    %v1526 = vand.u32 %v1427, 2147483648
    %v1527 = vor.u32 1.1754944e-38, %v1526
    %v1528 = vsel %vm1525, %v1527, %v1523
    %v1529 = vrcp.pop %v1430
    %v1530 = vmul.f32 %v1430, %v1529
    %v1531 = vsub.f32 1.0, %v1530
    %v1532 = vmul.f32 %v1529, %v1531
    %v1533 = vadd.f32 %v1529, %v1532
    %vm1534 = vweird.f32 %v1430
    %vm1535 = vweird.f32 %v1529
    %vm1536 = vmor %vm1534, %vm1535
    %v1537 = vsel %vm1536, %v1529, %v1533
    %v1538 = vand.u32 2147483647, %v1430
    %vm1539 = vcmp.eq.f32.partialorder %v1538, 8.507059e+37
    %v1540 = vand.u32 %v1430, 2147483648
    %v1541 = vor.u32 1.1754944e-38, %v1540
    %v1542 = vsel %vm1539, %v1541, %v1537
    %v1543 = vmul.f32 %v1392, %v1444
    %v1544 = vmul.f32 %v1394, %v1458
    %v1545 = vmul.f32 %v1396, %v1472
    %v1546 = vmul.f32 %v1398, %v1486
    %v1547 = vmul.f32 %v1400, %v1500
    %v1548 = vmul.f32 %v1402, %v1514
    %v1549 = vmul.f32 %v1404, %v1528
    %v1550 = vmul.f32 %v1406, %v1542
    %1551 = vrot.lane.b32.xlu0 %v1110, 64
    %v1552 = vpop.permute.xlu0 %1551
    %v1555 = vsel %vm178, %v1543, 0
    %1557 = vmatpush.msra.mxu0 0.0
    %1558 = vmatpush.msra.mxu0 0.0
    %1559 = vmatpush.msra.mxu0 0.0
    %1560 = vmatpush.msra.mxu0 0.0
    %1561 = vmatpush.msra.mxu0 0.0
    %1562 = vmatpush.msra.mxu0 0.0
    %1563 = vmatpush.msra.mxu0 0.0
    %1564 = vmatpush.msra.mxu0 0.0
    %1565 = vmatpush.msra.mxu0 0.0
    %1566 = vmatpush.msra.mxu0 0.0
    %1567 = vmatpush.msra.mxu0 0.0
    %1568 = vmatpush.msra.mxu0 0.0
    %1569 = vmatpush.msra.mxu0 0.0
    %1570 = vmatpush.msra.mxu0 0.0
    %1571 = vmatpush.msra.mxu0 0.0
    %1572 = vmatpush.msra.mxu0 %v1552
    %1573 = vmatmul.f32.gmra.mxu0 %v1555
    %v1574 = vpop.f32.mrf.mxu0
    %v1575 = vadd.f32 0.0, %v1574
    %1576 = vdwg.mxu0
    %1577 = vrot.lane.b32.xlu0 %v1113, 64
    %v1578 = vpop.permute.xlu0 %1577
    %v1581 = vsel %vm178, %v1544, 0
    %1583 = vmatpush.msra.mxu0 0.0
    %1584 = vmatpush.msra.mxu0 0.0
    %1585 = vmatpush.msra.mxu0 0.0
    %1586 = vmatpush.msra.mxu0 0.0
    %1587 = vmatpush.msra.mxu0 0.0
    %1588 = vmatpush.msra.mxu0 0.0
    %1589 = vmatpush.msra.mxu0 0.0
    %1590 = vmatpush.msra.mxu0 0.0
    %1591 = vmatpush.msra.mxu0 0.0
    %1592 = vmatpush.msra.mxu0 0.0
    %1593 = vmatpush.msra.mxu0 0.0
    %1594 = vmatpush.msra.mxu0 0.0
    %1595 = vmatpush.msra.mxu0 0.0
    %1596 = vmatpush.msra.mxu0 0.0
    %1597 = vmatpush.msra.mxu0 0.0
    %1598 = vmatpush.msra.mxu0 %v1578
    %1599 = vmatmul.f32.gmra.mxu0 %v1581
    %v1600 = vpop.f32.mrf.mxu0
    %v1601 = vadd.f32 0.0, %v1600
    %1602 = vdwg.mxu0
    %1603 = vrot.lane.b32.xlu0 %v1118, 64
    %v1604 = vpop.permute.xlu0 %1603
    %v1607 = vsel %vm178, %v1545, 0
    %1609 = vmatpush.msra.mxu0 0.0
    %1610 = vmatpush.msra.mxu0 0.0
    %1611 = vmatpush.msra.mxu0 0.0
    %1612 = vmatpush.msra.mxu0 0.0
    %1613 = vmatpush.msra.mxu0 0.0
    %1614 = vmatpush.msra.mxu0 0.0
    %1615 = vmatpush.msra.mxu0 0.0
    %1616 = vmatpush.msra.mxu0 0.0
    %1617 = vmatpush.msra.mxu0 0.0
    %1618 = vmatpush.msra.mxu0 0.0
    %1619 = vmatpush.msra.mxu0 0.0
    %1620 = vmatpush.msra.mxu0 0.0
    %1621 = vmatpush.msra.mxu0 0.0
    %1622 = vmatpush.msra.mxu0 0.0
    %1623 = vmatpush.msra.mxu0 0.0
    %1624 = vmatpush.msra.mxu0 %v1604
    %1625 = vmatmul.f32.gmra.mxu0 %v1607
    %v1626 = vpop.f32.mrf.mxu0
    %v1627 = vadd.f32 0.0, %v1626
    %1628 = vdwg.mxu0
    %1629 = vrot.lane.b32.xlu0 %v1120, 64
    %v1630 = vpop.permute.xlu0 %1629
    %v1633 = vsel %vm178, %v1546, 0
    %1635 = vmatpush.msra.mxu0 0.0
    %1636 = vmatpush.msra.mxu0 0.0
    %1637 = vmatpush.msra.mxu0 0.0
    %1638 = vmatpush.msra.mxu0 0.0
    %1639 = vmatpush.msra.mxu0 0.0
    %1640 = vmatpush.msra.mxu0 0.0
    %1641 = vmatpush.msra.mxu0 0.0
    %1642 = vmatpush.msra.mxu0 0.0
    %1643 = vmatpush.msra.mxu0 0.0
    %1644 = vmatpush.msra.mxu0 0.0
    %1645 = vmatpush.msra.mxu0 0.0
    %1646 = vmatpush.msra.mxu0 0.0
    %1647 = vmatpush.msra.mxu0 0.0
    %1648 = vmatpush.msra.mxu0 0.0
    %1649 = vmatpush.msra.mxu0 0.0
    %1650 = vmatpush.msra.mxu0 %v1630
    %1651 = vmatmul.f32.gmra.mxu0 %v1633
    %v1652 = vpop.f32.mrf.mxu0
    %v1653 = vadd.f32 0.0, %v1652
    %1654 = vdwg.mxu0
    %1655 = vrot.lane.b32.xlu0 %v1124, 64
    %v1656 = vpop.permute.xlu0 %1655
    %v1659 = vsel %vm178, %v1547, 0
    %1661 = vmatpush.msra.mxu0 0.0
    %1662 = vmatpush.msra.mxu0 0.0
    %1663 = vmatpush.msra.mxu0 0.0
    %1664 = vmatpush.msra.mxu0 0.0
    %1665 = vmatpush.msra.mxu0 0.0
    %1666 = vmatpush.msra.mxu0 0.0
    %1667 = vmatpush.msra.mxu0 0.0
    %1668 = vmatpush.msra.mxu0 0.0
    %1669 = vmatpush.msra.mxu0 0.0
    %1670 = vmatpush.msra.mxu0 0.0
    %1671 = vmatpush.msra.mxu0 0.0
    %1672 = vmatpush.msra.mxu0 0.0
    %1673 = vmatpush.msra.mxu0 0.0
    %1674 = vmatpush.msra.mxu0 0.0
    %1675 = vmatpush.msra.mxu0 0.0
    %1676 = vmatpush.msra.mxu0 %v1656
    %1677 = vmatmul.f32.gmra.mxu0 %v1659
    %v1678 = vpop.f32.mrf.mxu0
    %v1679 = vadd.f32 0.0, %v1678
    %1680 = vdwg.mxu0
    %1681 = vrot.lane.b32.xlu0 %v1126, 64
    %v1682 = vpop.permute.xlu0 %1681
    %v1685 = vsel %vm178, %v1548, 0
    %1687 = vmatpush.msra.mxu0 0.0
    %1688 = vmatpush.msra.mxu0 0.0
    %1689 = vmatpush.msra.mxu0 0.0
    %1690 = vmatpush.msra.mxu0 0.0
    %1691 = vmatpush.msra.mxu0 0.0
    %1692 = vmatpush.msra.mxu0 0.0
    %1693 = vmatpush.msra.mxu0 0.0
    %1694 = vmatpush.msra.mxu0 0.0
    %1695 = vmatpush.msra.mxu0 0.0
    %1696 = vmatpush.msra.mxu0 0.0
    %1697 = vmatpush.msra.mxu0 0.0
    %1698 = vmatpush.msra.mxu0 0.0
    %1699 = vmatpush.msra.mxu0 0.0
    %1700 = vmatpush.msra.mxu0 0.0
    %1701 = vmatpush.msra.mxu0 0.0
    %1702 = vmatpush.msra.mxu0 %v1682
    %1703 = vmatmul.f32.gmra.mxu0 %v1685
    %v1704 = vpop.f32.mrf.mxu0
    %v1705 = vadd.f32 0.0, %v1704
    %1706 = vdwg.mxu0
    %1707 = vrot.lane.b32.xlu0 %v1130, 64
    %v1708 = vpop.permute.xlu0 %1707
    %v1711 = vsel %vm178, %v1549, 0
    %1713 = vmatpush.msra.mxu0 0.0
    %1714 = vmatpush.msra.mxu0 0.0
    %1715 = vmatpush.msra.mxu0 0.0
    %1716 = vmatpush.msra.mxu0 0.0
    %1717 = vmatpush.msra.mxu0 0.0
    %1718 = vmatpush.msra.mxu0 0.0
    %1719 = vmatpush.msra.mxu0 0.0
    %1720 = vmatpush.msra.mxu0 0.0
    %1721 = vmatpush.msra.mxu0 0.0
    %1722 = vmatpush.msra.mxu0 0.0
    %1723 = vmatpush.msra.mxu0 0.0
    %1724 = vmatpush.msra.mxu0 0.0
    %1725 = vmatpush.msra.mxu0 0.0
    %1726 = vmatpush.msra.mxu0 0.0
    %1727 = vmatpush.msra.mxu0 0.0
    %1728 = vmatpush.msra.mxu0 %v1708
    %1729 = vmatmul.f32.gmra.mxu0 %v1711
    %v1730 = vpop.f32.mrf.mxu0
    %v1731 = vadd.f32 0.0, %v1730
    %1732 = vdwg.mxu0
    %1733 = vrot.lane.b32.xlu0 %v1132, 64
    %v1734 = vpop.permute.xlu0 %1733
    %v1737 = vsel %vm178, %v1550, 0
    %1739 = vmatpush.msra.mxu0 0.0
    %1740 = vmatpush.msra.mxu0 0.0
    %1741 = vmatpush.msra.mxu0 0.0
    %1742 = vmatpush.msra.mxu0 0.0
    %1743 = vmatpush.msra.mxu0 0.0
    %1744 = vmatpush.msra.mxu0 0.0
    %1745 = vmatpush.msra.mxu0 0.0
    %1746 = vmatpush.msra.mxu0 0.0
    %1747 = vmatpush.msra.mxu0 0.0
    %1748 = vmatpush.msra.mxu0 0.0
    %1749 = vmatpush.msra.mxu0 0.0
    %1750 = vmatpush.msra.mxu0 0.0
    %1751 = vmatpush.msra.mxu0 0.0
    %1752 = vmatpush.msra.mxu0 0.0
    %1753 = vmatpush.msra.mxu0 0.0
    %1754 = vmatpush.msra.mxu0 %v1734
    %1755 = vmatmul.f32.gmra.mxu0 %v1737
    %v1756 = vpop.f32.mrf.mxu0
    %v1757 = vadd.f32 0.0, %v1756
    %1758 = vdwg.mxu0
    %1761 = vrot.lane.b32.xlu0 %v1627, 8
    %v1762 = vpop.permute.xlu0 %1761
    %1763 = vrot.lane.b32.xlu0 %v1653, 8
    %v1764 = vpop.permute.xlu0 %1763
    %1769 = vrot.lane.b32.xlu0 %v1679, 16
    %v1770 = vpop.permute.xlu0 %1769
    %1771 = vrot.lane.b32.xlu0 %v1705, 16
    %v1772 = vpop.permute.xlu0 %1771
    %1777 = vrot.lane.b32.xlu0 %v1731, 24
    %v1778 = vpop.permute.xlu0 %1777
    %1779 = vrot.lane.b32.xlu0 %v1757, 24
    %v1780 = vpop.permute.xlu0 %1779
    %v1783 = vsel %vm178, %v1575, %v1762
    %v1784 = vsel %vm178, %v1601, %v1764
    %v1785 = vsel %vm819, %v1783, %v1770
    %v1786 = vsel %vm819, %v1784, %v1772
    %v1787 = vsel %vm822, %v1785, %v1778
    %v1788 = vsel %vm822, %v1786, %v1780
    %s1789 = scalar_lea.vmem %s5, 32
    %v1790 = vld [vmem:[%s1789] sm:$0xff]
    %v1791 = vld [vmem:[%s1789 + $0x8] sm:$0xff]
    %v1792 = vld [vmem:[%s1789 + $0x10] sm:$0xff]
    %v1793 = vld [vmem:[%s1789 + $0x18] sm:$0xff]
    %s1794 = scalar_lea.vmem %s6, 1
    %v1795 = vld [vmem:[%s1794] sm:$0x1]
    %v1797 = vperm.slane %v1795, 0
    %v1800 = vsel %vm51, %v1787, 0
    %v1803 = vsel %vm51, %v1788, 0
    %1805 = vmatpush.msra.mxu0 0.0
    %1806 = vmatpush.msra.mxu0 0.0
    %1807 = vmatpush.msra.mxu0 0.0
    %1808 = vmatpush.msra.mxu0 0.0
    %1809 = vmatpush.msra.mxu0 0.0
    %1810 = vmatpush.msra.mxu0 0.0
    %1811 = vmatpush.msra.mxu0 0.0
    %1812 = vmatpush.msra.mxu0 0.0
    %1813 = vmatpush.msra.mxu0 0.0
    %1814 = vmatpush.msra.mxu0 0.0
    %1815 = vmatpush.msra.mxu0 0.0
    %1816 = vmatpush.msra.mxu0 0.0
    %1817 = vmatpush.msra.mxu0 %v1793
    %1818 = vmatpush.msra.mxu0 %v1792
    %1819 = vmatpush.msra.mxu0 %v1791
    %1820 = vmatpush.msra.mxu0 %v1790
    %1821 = vmatmul.f32.gmra.mxu0 %v1800
    %v1822 = vpop.f32.mrf.mxu0
    %v1823 = vadd.f32 %v1797, %v1822
    %1824 = vmatmul.f32.gmra.mxu0 %v1803
    %v1825 = vpop.f32.mrf.mxu0
    %v1826 = vadd.f32 %v1797, %v1825
    %1827 = vdwg.mxu0
    %v1828 = vperm.slane %v48, 2
    %v1829 = vperm.slane %v50, 2
    %v1830 = vmul.f32 %v1828, %v1823
    %v1831 = vmul.f32 %v1829, %v1826
    %v1832 = vadd.f32 %v1022, %v1830
    %v1833 = vadd.f32 %v1023, %v1831
    %v1834 = vsel %vm51, %v1832, 0.0
    %1835 = vadd.xlane.f32.xlu0 %v1834
    %v1836 = vpop.xlane.xlu0 %1835
    %v1837 = vsel %vm51, %v1833, 0.0
    %1838 = vadd.xlane.f32.xlu0 %v1837
    %v1839 = vpop.xlane.xlu0 %1838
    %v1840 = vmul.f32 %v1836, %v64
    %v1841 = vmul.f32 %v1839, %v64
    %v1842 = vsub.f32 %v1832, %v1840
    %v1843 = vsub.f32 %v1833, %v1841
    %v1844 = vmul.f32 %v1842, %v1842
    %v1845 = vmul.f32 %v1843, %v1843
    %v1846 = vsel %vm51, %v1844, 0.0
    %1847 = vadd.xlane.f32.xlu0 %v1846
    %v1848 = vpop.xlane.xlu0 %1847
    %v1849 = vsel %vm51, %v1845, 0.0
    %1850 = vadd.xlane.f32.xlu0 %v1849
    %v1851 = vpop.xlane.xlu0 %1850
    %v1852 = vmul.f32 %v1848, %v64
    %v1853 = vmul.f32 %v1851, %v64
    %v1854 = vadd.f32 %v1852, 1e-06
    %v1855 = vadd.f32 %v1853, 1e-06
    %v1856 = vrsqrt.pop %v1854
    %v1857 = vmul.f32 %v1856, %v1854
    %v1858 = vmul.f32 %v1857, %v1856
    %v1859 = vmul.f32 0.5, %v1858
    %v1860 = vsub.f32 1.5, %v1859
    %v1861 = vmul.f32 %v1856, %v1860
    %vm1862 = vweird.f32 %v1854
    %vm1863 = vweird.f32 %v1856
    %vm1864 = vmor %vm1862, %vm1863
    %v1865 = vsel %vm1864, %v1856, %v1861
    %v1866 = vrsqrt.pop %v1855
    %v1867 = vmul.f32 %v1866, %v1855
    %v1868 = vmul.f32 %v1867, %v1866
    %v1869 = vmul.f32 0.5, %v1868
    %v1870 = vsub.f32 1.5, %v1869
    %v1871 = vmul.f32 %v1866, %v1870
    %vm1872 = vweird.f32 %v1855
    %vm1873 = vweird.f32 %v1866
    %vm1874 = vmor %vm1872, %vm1873
    %v1875 = vsel %vm1874, %v1866, %v1871
    %v1876 = vmul.f32 %v1842, %v1865
    %v1877 = vmul.f32 %v1843, %v1875
    %v1878 = vperm.slane %v48, 4
    %v1879 = vperm.slane %v50, 4
    %v1880 = vmul.f32 %v1876, %v1878
    %v1881 = vmul.f32 %v1877, %v1879
    %v1882 = vperm.slane %v48, 3
    %v1883 = vperm.slane %v50, 3
    %v1884 = vadd.f32 %v1880, %v1882
    %v1885 = vadd.f32 %v1881, %v1883
    %s1886 = scalar_lea.vmem %s7, 32
    %v1887 = vld [vmem:[%s1886] sm:$0xff]
    %v1888 = vld [vmem:[%s1886 + $0x8] sm:$0xff]
    %v1889 = vld [vmem:[%s1886 + $0x10] sm:$0xff]
    %v1890 = vld [vmem:[%s1886 + $0x18] sm:$0xff]
    %s1891 = scalar_lea.vmem %s8, 1
    %v1892 = vld [vmem:[%s1891] sm:$0x1]
    %v1894 = vperm.slane %v1892, 0
    %v1897 = vsel %vm51, %v1884, 0
    %v1900 = vsel %vm51, %v1885, 0
    %1902 = vmatpush.msra.mxu0 0.0
    %1903 = vmatpush.msra.mxu0 0.0
    %1904 = vmatpush.msra.mxu0 0.0
    %1905 = vmatpush.msra.mxu0 0.0
    %1906 = vmatpush.msra.mxu0 0.0
    %1907 = vmatpush.msra.mxu0 0.0
    %1908 = vmatpush.msra.mxu0 0.0
    %1909 = vmatpush.msra.mxu0 0.0
    %1910 = vmatpush.msra.mxu0 0.0
    %1911 = vmatpush.msra.mxu0 0.0
    %1912 = vmatpush.msra.mxu0 0.0
    %1913 = vmatpush.msra.mxu0 0.0
    %1914 = vmatpush.msra.mxu0 %v1890
    %1915 = vmatpush.msra.mxu0 %v1889
    %1916 = vmatpush.msra.mxu0 %v1888
    %1917 = vmatpush.msra.mxu0 %v1887
    %1918 = vmatmul.f32.gmra.mxu0 %v1897
    %v1919 = vpop.f32.mrf.mxu0
    %v1920 = vadd.f32 %v1894, %v1919
    %1921 = vmatmul.f32.gmra.mxu0 %v1900
    %v1922 = vpop.f32.mrf.mxu0
    %v1923 = vadd.f32 %v1894, %v1922
    %1924 = vdwg.mxu0
    %v1925 = vmul.f32 %v1920, 0.5
    %v1926 = vmul.f32 %v1923, 0.5
    %v1927 = vmul.f32 %v1920, 0.044715
    %v1928 = vmul.f32 %v1923, 0.044715
    %v1929 = vmul.f32 %v1927, %v1920
    %v1930 = vmul.f32 %v1928, %v1923
    %v1931 = vmul.f32 %v1929, %v1920
    %v1932 = vmul.f32 %v1930, %v1923
    %v1933 = vadd.f32 %v1920, %v1931
    %v1934 = vadd.f32 %v1923, %v1932
    %v1935 = vmul.f32 %v1933, 0.7978846
    %v1936 = vmul.f32 %v1934, 0.7978846
    %v1937 = vtanh.pop %v1935
    %v1938 = vtanh.pop %v1936
    %v1939 = vadd.f32 %v1937, 1.0
    %v1940 = vadd.f32 %v1938, 1.0
    %v1941 = vmul.f32 %v1925, %v1939
    %v1942 = vmul.f32 %v1926, %v1940
    %s1943 = scalar_lea.vmem %s9, 128
    %v1944 = vld [vmem:[%s1943] sm:$0xff]
    %v1945 = vld [vmem:[%s1943 + $0x8] sm:$0xff]
    %v1946 = vld [vmem:[%s1943 + $0x10] sm:$0xff]
    %v1947 = vld [vmem:[%s1943 + $0x18] sm:$0xff]
    %v1948 = vld [vmem:[%s1943 + $0x20] sm:$0xff]
    %v1949 = vld [vmem:[%s1943 + $0x28] sm:$0xff]
    %v1950 = vld [vmem:[%s1943 + $0x30] sm:$0xff]
    %v1951 = vld [vmem:[%s1943 + $0x38] sm:$0xff]
    %v1952 = vld [vmem:[%s1943 + $0x40] sm:$0xff]
    %v1953 = vld [vmem:[%s1943 + $0x48] sm:$0xff]
    %v1954 = vld [vmem:[%s1943 + $0x50] sm:$0xff]
    %v1955 = vld [vmem:[%s1943 + $0x58] sm:$0xff]
    %v1956 = vld [vmem:[%s1943 + $0x60] sm:$0xff]
    %v1957 = vld [vmem:[%s1943 + $0x68] sm:$0xff]
    %v1958 = vld [vmem:[%s1943 + $0x70] sm:$0xff]
    %v1959 = vld [vmem:[%s1943 + $0x78] sm:$0xff]
    %s1960 = scalar_lea.vmem %s10, 1
    %v1961 = vld [vmem:[%s1960] sm:$0x1]
    %v1963 = vperm.slane %v1961, 0
    %1965 = vmatpush.msra.mxu0 %v1959
    %1966 = vmatpush.msra.mxu0 %v1958
    %1967 = vmatpush.msra.mxu0 %v1957
    %1968 = vmatpush.msra.mxu0 %v1956
    %1969 = vmatpush.msra.mxu0 %v1955
    %1970 = vmatpush.msra.mxu0 %v1954
    %1971 = vmatpush.msra.mxu0 %v1953
    %1972 = vmatpush.msra.mxu0 %v1952
    %1973 = vmatpush.msra.mxu0 %v1951
    %1974 = vmatpush.msra.mxu0 %v1950
    %1975 = vmatpush.msra.mxu0 %v1949
    %1976 = vmatpush.msra.mxu0 %v1948
    %1977 = vmatpush.msra.mxu0 %v1947
    %1978 = vmatpush.msra.mxu0 %v1946
    %1979 = vmatpush.msra.mxu0 %v1945
    %1980 = vmatpush.msra.mxu0 %v1944
    %1981 = vmatmul.f32.gmra.mxu0 %v1941
    %v1982 = vpop.f32.mrf.mxu0
    %v1983 = vadd.f32 %v1963, %v1982
    %1984 = vmatmul.f32.gmra.mxu0 %v1942
    %v1985 = vpop.f32.mrf.mxu0
    %v1986 = vadd.f32 %v1963, %v1985
    %1987 = vdwg.mxu0
    %v1988 = vperm.slane %v48, 5
    %v1989 = vperm.slane %v50, 5
    %v1990 = vmul.f32 %v1988, %v1983
    %v1991 = vmul.f32 %v1989, %v1986
    %v1992 = vadd.f32 %v1832, %v1990
    %v1993 = vadd.f32 %v1833, %v1991
    %v1994 = vld [vmem:[%s2] sm:$0x3]
    %v1995 = vld [vmem:[%s2 + $0x2] sm:$0x3]
    %v1996 = vsel %vm51, %v1992, 0.0
    %1997 = vadd.xlane.f32.xlu0 %v1996
    %v1998 = vpop.xlane.xlu0 %1997
    %v1999 = vsel %vm51, %v1993, 0.0
    %2000 = vadd.xlane.f32.xlu0 %v1999
    %v2001 = vpop.xlane.xlu0 %2000
    %v2002 = vmul.f32 %v1998, %v64
    %v2003 = vmul.f32 %v2001, %v64
    %v2004 = vsub.f32 %v1992, %v2002
    %v2005 = vsub.f32 %v1993, %v2003
    %v2006 = vmul.f32 %v2004, %v2004
    %v2007 = vmul.f32 %v2005, %v2005
    %v2008 = vsel %vm51, %v2006, 0.0
    %2009 = vadd.xlane.f32.xlu0 %v2008
    %v2010 = vpop.xlane.xlu0 %2009
    %v2011 = vsel %vm51, %v2007, 0.0
    %2012 = vadd.xlane.f32.xlu0 %v2011
    %v2013 = vpop.xlane.xlu0 %2012
    %v2014 = vmul.f32 %v2010, %v64
    %v2015 = vmul.f32 %v2013, %v64
    %v2016 = vadd.f32 %v2014, 1e-06
    %v2017 = vadd.f32 %v2015, 1e-06
    %v2018 = vrsqrt.pop %v2016
    %v2019 = vmul.f32 %v2018, %v2016
    %v2020 = vmul.f32 %v2019, %v2018
    %v2021 = vmul.f32 0.5, %v2020
    %v2022 = vsub.f32 1.5, %v2021
    %v2023 = vmul.f32 %v2018, %v2022
    %vm2024 = vweird.f32 %v2016
    %vm2025 = vweird.f32 %v2018
    %vm2026 = vmor %vm2024, %vm2025
    %v2027 = vsel %vm2026, %v2018, %v2023
    %v2028 = vrsqrt.pop %v2017
    %v2029 = vmul.f32 %v2028, %v2017
    %v2030 = vmul.f32 %v2029, %v2028
    %v2031 = vmul.f32 0.5, %v2030
    %v2032 = vsub.f32 1.5, %v2031
    %v2033 = vmul.f32 %v2028, %v2032
    %vm2034 = vweird.f32 %v2017
    %vm2035 = vweird.f32 %v2028
    %vm2036 = vmor %vm2034, %vm2035
    %v2037 = vsel %vm2036, %v2028, %v2033
    %v2038 = vmul.f32 %v2004, %v2027
    %v2039 = vmul.f32 %v2005, %v2037
    %v2040 = vperm.slane %v1994, 1
    %v2041 = vperm.slane %v1995, 1
    %v2042 = vmul.f32 %v2038, %v2040
    %v2043 = vmul.f32 %v2039, %v2041
    %v2044 = vperm.slane %v1994, 0
    %v2045 = vperm.slane %v1995, 0
    %v2046 = vadd.f32 %v2042, %v2044
    %v2047 = vadd.f32 %v2043, %v2045
    %v2048 = vld [vmem:[%s11] sm:$0xff]
    %v2049 = vld [vmem:[%s11 + $0x8] sm:$0xff]
    %v2050 = vld [vmem:[%s11 + $0x10] sm:$0xff]
    %v2051 = vld [vmem:[%s11 + $0x18] sm:$0xff]
    %v2052 = vld [vmem:[%s12] sm:$0x1]
    %v2054 = vperm.slane %v2052, 0
    %v2057 = vsel %vm51, %v2046, 0
    %v2060 = vsel %vm51, %v2047, 0
    %2062 = vmatpush.msra.mxu0 0.0
    %2063 = vmatpush.msra.mxu0 0.0
    %2064 = vmatpush.msra.mxu0 0.0
    %2065 = vmatpush.msra.mxu0 0.0
    %2066 = vmatpush.msra.mxu0 0.0
    %2067 = vmatpush.msra.mxu0 0.0
    %2068 = vmatpush.msra.mxu0 0.0
    %2069 = vmatpush.msra.mxu0 0.0
    %2070 = vmatpush.msra.mxu0 0.0
    %2071 = vmatpush.msra.mxu0 0.0
    %2072 = vmatpush.msra.mxu0 0.0
    %2073 = vmatpush.msra.mxu0 0.0
    %2074 = vmatpush.msra.mxu0 %v2051
    %2075 = vmatpush.msra.mxu0 %v2050
    %2076 = vmatpush.msra.mxu0 %v2049
    %2077 = vmatpush.msra.mxu0 %v2048
    %2078 = vmatmul.f32.gmra.mxu0 %v2057
    %v2079 = vpop.f32.mrf.mxu0
    %v2080 = vadd.f32 %v2054, %v2079
    %2081 = vmatmul.f32.gmra.mxu0 %v2060
    %v2082 = vpop.f32.mrf.mxu0
    %v2083 = vadd.f32 %v2054, %v2082
    %2084 = vdwg.mxu0
    %2085 = vst [vmem:[#allocation2] sm:$0xff] %v2080
    %2086 = vst [vmem:[#allocation2 + $0x8] sm:$0xff] %v2083
    // Predicated region
    $region54: #{dit1d_forward.1} parent=1 // pred_check
      _
    $region55: #{dit1d_forward.1} parent=1 // pred_check_branch
      %2088 = sbr.rel (0) target = $region57
    $region56: #{dit1d_forward.1} parent=1 // pred_region
      %2090 = vsyncadd [#allocation3], 0
      %s2091 = sshll.u32 [#allocation2], 4
      %s2092 = int_to_ptr.vmem [resolvable:$true] %s2091
      %s2093 = sshll.u32 %s13, 4
      %s2094 = int_to_ptr.hbm [resolvable:$true] %s2093
      %2099 = dma.vmem_to_hbm [thread:$0]  %s2092, 256, %s2094, [#allocation3], 128, 128, 8
    $region57: #{dit1d_forward.1} parent=1 // pred_fallthru
      _
    // Predicated region
    $region58: #{dit1d_forward.1} parent=1 // pred_check
      _
    $region59: #{dit1d_forward.1} parent=1 // pred_check_branch
      %2101 = sbr.rel (0) target = $region61
    $region60: #{dit1d_forward.1} parent=1 // pred_region
      %2103 = dma.done [#allocation3], 256
    $region61: #{dit1d_forward.1} parent=1 // pred_fallthru
      _
    %2104 = vsyncpa [#allocation3], 1

</llo_original>
